<compile_context>
chip_gen: v6e
topology: v6e:2x2x1
jax: 0.10.0
libtpu: 0.0.40
codegen_flags: <defaults>
</compile_context>

<pallas_src>
import functools

import jax
import jax.numpy as jnp
from jax import lax
from jax.experimental import pallas as pl
from jax.experimental.pallas import tpu as pltpu


def lstm_tagger_kernel(tokens_ref, emb_ref, wih_t_ref, whh_t_ref, b_ref,
                       wtag_t_ref, btag_ref, out_ref, *,
                       hidden_pad, seq_len, batch_block, vocab_size):
    Hp = hidden_pad
    Bb = batch_block
    g = pl.program_id(0)

    # ---- Embedding gather: scalar ids from SMEM -> dynamic sublane loads, ----
    # ---- concatenated into a register value (no VMEM scratch round-trip). ----
    # Rows are t-major: row (t*Bb + j) = sentence j of this block, time step t.
    # TODO(synk): for realistic vocab sizes keep the table in HBM
    # (memory_space=pl.ANY) and DMA only the needed rows so VMEM stays flat w.r.t.
    # vocab (required on v7x with 64 MiB physical VMEM / 32 MiB default scoped).
    rows = []
    for t in range(seq_len):
        for j in range(Bb):
            tok = tokens_ref[g * Bb + j, t]
            tok = jnp.clip(tok, 0, vocab_size - 1)      # no HW bounds check on TPU
            rows.append(emb_ref[pl.ds(tok, 1), :])
    x = jnp.concatenate(rows, axis=0)                    # (Bb*seq, E) f32

    # ---- Hoisted input projection: one MXU matmul, bf16 operands, f32 acc. ----
    gates_x = (jnp.dot(x.astype(jnp.bfloat16), wih_t_ref[...],
                       preferred_element_type=jnp.float32)
               + b_ref[...])                             # (Bb*seq, 4Hp) f32

    whh_t = whh_t_ref[...]                               # (Hp, 4Hp) bf16

    # ---- LSTM recurrence, fully unrolled (seq is small & static). ----
    # PyTorch gate order i, f, g, o; each gate occupies full 128-lane rows thanks to
    # the Hp padding, so these slices are free vreg selections (no lane rolls).
    # TODO(synk): switch to lax.fori_loop(..., unroll=4..8) if seq grows past ~32.
    h = jnp.zeros((Bb, Hp), jnp.float32)
    c = jnp.zeros((Bb, Hp), jnp.float32)
    hs = []
    for t in range(seq_len):
        gates = (jnp.dot(h.astype(jnp.bfloat16), whh_t,
                         preferred_element_type=jnp.float32)
                 + gates_x[t * Bb:(t + 1) * Bb, :])      # (Bb, 4Hp) f32
        i = jax.nn.sigmoid(gates[:, 0 * Hp:1 * Hp])
        f = jax.nn.sigmoid(gates[:, 1 * Hp:2 * Hp])
        gg = jnp.tanh(gates[:, 2 * Hp:3 * Hp])
        o = jax.nn.sigmoid(gates[:, 3 * Hp:4 * Hp])
        c = f * c + i * gg
        h = o * jnp.tanh(c)
        hs.append(h)
    h_all = jnp.concatenate(hs, axis=0)                  # (Bb*seq, Hp), t-major

    # ---- hidden2tag + log_softmax over the tag axis (PyTorch dim=1). ----
    # TODO(synk): make the tag axis lane-dense (pad/transpose to >=128) if the
    # tagset or batch grows; at T=8 the masked store is negligible.
    tag_space = (jnp.dot(h_all.astype(jnp.bfloat16), wtag_t_ref[...],
                         preferred_element_type=jnp.float32)
                 + btag_ref[...])                        # (Bb*seq, T) f32
    m = jnp.max(tag_space, axis=1, keepdims=True)
    lse = m + jnp.log(jnp.sum(jnp.exp(tag_space - m), axis=1, keepdims=True))
    out_ref[...] = tag_space - lse


def _pack_params(params, hidden_pad):
    """Transpose / pad / bf16-cast weights into the kernel layout.

    Gate k (PyTorch order i,f,g,o) occupies columns [k*Hp, k*Hp+H) of the 4Hp axis;
    padded columns/rows are zero, which keeps padded hidden lanes exactly zero.
    """
    emb = params["emb"].astype(jnp.float32)
    w_ih, w_hh = params["w_ih"], params["w_hh"]
    bias = params["b_ih"] + params["b_hh"]
    w_tag, b_tag = params["w_tag"], params["b_tag"]
    _, E = w_ih.shape
    H = w_hh.shape[1]
    T = w_tag.shape[0]
    Hp = hidden_pad

    wih_t = jnp.zeros((E, 4 * Hp), jnp.float32)
    whh_t = jnp.zeros((Hp, 4 * Hp), jnp.float32)
    b = jnp.zeros((1, 4 * Hp), jnp.float32)
    for k in range(4):
        wih_t = wih_t.at[:, k * Hp:k * Hp + H].set(w_ih[k * H:(k + 1) * H, :].T)
        whh_t = whh_t.at[:H, k * Hp:k * Hp + H].set(w_hh[k * H:(k + 1) * H, :].T)
        b = b.at[0, k * Hp:k * Hp + H].set(bias[k * H:(k + 1) * H])
    wtag_t = jnp.zeros((Hp, T), jnp.float32).at[:H, :].set(w_tag.T)
    btag = b_tag.reshape(1, T).astype(jnp.float32)

    return (emb,
            wih_t.astype(jnp.bfloat16),
            whh_t.astype(jnp.bfloat16),
            b,
            wtag_t.astype(jnp.bfloat16),
            btag)


def lstm_tagger_forward_batched(tokens, params, *, batch_block=None):
    """tokens: (B, seq) int32 -> (B, seq, tagset) float32 log-probs."""
    B, seq = tokens.shape
    vocab, _ = params["emb"].shape
    H = params["w_hh"].shape[1]
    T = params["w_tag"].shape[0]
    Hp = ((H + 127) // 128) * 128          # pad hidden to whole 128-lane rows

    if batch_block is None:
        batch_block = min(B, 8)
    # Keep the (batch_block*seq, T) output block 8-sublane aligned, unless a single
    # block spans the whole (padded) batch (block == full array is always legal).
    if (batch_block * seq) % 8 != 0:
        batch_block = B
    b_pad = ((B + batch_block - 1) // batch_block) * batch_block
    nb = b_pad // batch_block

    tokens_pad = jnp.zeros((b_pad, seq), jnp.int32).at[:B].set(tokens.astype(jnp.int32))
    packed = _pack_params(params, Hp)

    kernel = functools.partial(lstm_tagger_kernel, hidden_pad=Hp, seq_len=seq,
                               batch_block=batch_block, vocab_size=vocab)
    vmem = pl.BlockSpec(memory_space=pltpu.MemorySpace.VMEM)

    out2d = pl.pallas_call(
        kernel,
        out_shape=jax.ShapeDtypeStruct((b_pad * seq, T), jnp.float32),
        grid_spec=pltpu.PrefetchScalarGridSpec(
            num_scalar_prefetch=1,                 # token ids -> SMEM
            grid=(nb,),
            in_specs=[vmem] * 6,                   # weights resident in VMEM (tiny)
            out_specs=pl.BlockSpec((batch_block * seq, T),
                                   lambda g, tok_ref: (g, 0)),
        ),
        compiler_params=pltpu.CompilerParams(
            # Independent batch blocks -> both TensorCores on v7x, no-op on v5e/v6e.
            dimension_semantics=("parallel",),
        ),
    )(tokens_pad, *packed)

    # Rows within a block are t-major: global row = g*Bb*seq + t*Bb + j.
    out = (out2d.reshape(nb, seq, batch_block, T)
                 .transpose(0, 2, 1, 3)
                 .reshape(b_pad, seq, T))
    return out[:B]


def lstm_tagger_forward(tokens, params):
    """Single sentence, matching LSTMTagger.forward: (seq,) -> (seq, tagset)."""
    return lstm_tagger_forward_batched(tokens[None, :], params, batch_block=1)[0]


def reference_forward(tokens, params):
    """Pure-JAX f32 reference matching PyTorch LSTMTagger.forward semantics."""
    emb = params["emb"][tokens]                              # (seq, E)
    H = params["w_hh"].shape[1]
    w_ih_t = params["w_ih"].T
    w_hh_t = params["w_hh"].T
    b = params["b_ih"] + params["b_hh"]

    def step(carry, x_t):
        h, c = carry
        gates = x_t @ w_ih_t + h @ w_hh_t + b
        i = jax.nn.sigmoid(gates[0 * H:1 * H])
        f = jax.nn.sigmoid(gates[1 * H:2 * H])
        g = jnp.tanh(gates[2 * H:3 * H])
        o = jax.nn.sigmoid(gates[3 * H:4 * H])
        c_new = f * c + i * g
        h_new = o * jnp.tanh(c_new)
        return (h_new, c_new), h_new

    h0 = jnp.zeros((H,), jnp.float32)
    _, lstm_out = lax.scan(step, (h0, h0), emb)
    tag_space = lstm_out @ params["w_tag"].T + params["b_tag"]
    return jax.nn.log_softmax(tag_space, axis=1)


if __name__ == "__main__":
    EMBEDDING_DIM = 32
    HIDDEN_DIM = 32
    VOCAB_SIZE = 16
    TAGSET_SIZE = 8
    SEQ_LEN = 8
    BATCH = 4

    key = jax.random.PRNGKey(0)
    keys = jax.random.split(key, 8)

    params = {
        "emb":   0.1 * jax.random.normal(keys[0], (VOCAB_SIZE, EMBEDDING_DIM), jnp.float32),
        "w_ih":  0.1 * jax.random.normal(keys[1], (4 * HIDDEN_DIM, EMBEDDING_DIM), jnp.float32),
        "w_hh":  0.1 * jax.random.normal(keys[2], (4 * HIDDEN_DIM, HIDDEN_DIM), jnp.float32),
        "b_ih":  0.1 * jax.random.normal(keys[3], (4 * HIDDEN_DIM,), jnp.float32),
        "b_hh":  0.1 * jax.random.normal(keys[4], (4 * HIDDEN_DIM,), jnp.float32),
        "w_tag": 0.1 * jax.random.normal(keys[5], (TAGSET_SIZE, HIDDEN_DIM), jnp.float32),
        "b_tag": 0.1 * jax.random.normal(keys[6], (TAGSET_SIZE,), jnp.float32),
    }
    sentences = jax.random.randint(keys[7], (BATCH, SEQ_LEN), 0, VOCAB_SIZE, dtype=jnp.int32)

    # Batched path: grid=(2,) over batch blocks of 2 sentences each (parallel axis).
    out_b = jax.block_until_ready(
        lstm_tagger_forward_batched(sentences, params, batch_block=2))
    ref_b = jax.vmap(reference_forward, in_axes=(0, None))(sentences, params)
    assert out_b.shape == (BATCH, SEQ_LEN, TAGSET_SIZE), out_b.shape
    # bf16 MXU operands (f32 accumulation) vs the f32 reference -> loose tolerance.
    assert jnp.allclose(out_b, ref_b, atol=2e-2, rtol=2e-2), \
        float(jnp.abs(out_b - ref_b).max())

    # Single-sentence path matching the PyTorch module's forward signature.
    out_1 = jax.block_until_ready(lstm_tagger_forward(sentences[0], params))
    ref_1 = reference_forward(sentences[0], params)
    assert out_1.shape == (SEQ_LEN, TAGSET_SIZE), out_1.shape
    assert jnp.allclose(out_1, ref_1, atol=2e-2, rtol=2e-2), \
        float(jnp.abs(out_1 - ref_1).max())

    print("KERNEL_OK")
</pallas_src>

<mosaic_0001>
module attributes {stable_mosaic.version = 11 : i64} {
  func.func @lstm_tagger_kernel(%arg0: i32, %arg1: memref<4x8xi32, #tpu.memory_space<smem>>, %arg2: memref<16x32xf32, #tpu.memory_space<vmem>>, %arg3: memref<32x512xbf16, #tpu.memory_space<vmem>>, %arg4: memref<128x512xbf16, #tpu.memory_space<vmem>>, %arg5: memref<1x512xf32, #tpu.memory_space<vmem>>, %arg6: memref<128x8xbf16, #tpu.memory_space<vmem>>, %arg7: memref<1x8xf32, #tpu.memory_space<vmem>>, %arg8: memref<16x8xf32, #tpu.memory_space<vmem>>) attributes {dimension_semantics = [#tpu.dimension_semantics<parallel>], iteration_bounds = array<i64: 2>, scalar_prefetch = 1 : i64, scratch_operands = 0 : i64, tpu.core_type = #tpu.core_type<tc>, window_params = [{pipeline_mode = #tpu.pipeline_mode<synchronous>, transform_indices = @transform_0, window_bounds = array<i64: 16, 32>}, {pipeline_mode = #tpu.pipeline_mode<synchronous>, transform_indices = @transform_1, window_bounds = array<i64: 32, 512>}, {pipeline_mode = #tpu.pipeline_mode<synchronous>, transform_indices = @transform_2, window_bounds = array<i64: 128, 512>}, {pipeline_mode = #tpu.pipeline_mode<synchronous>, transform_indices = @transform_3, window_bounds = array<i64: 1, 512>}, {pipeline_mode = #tpu.pipeline_mode<synchronous>, transform_indices = @transform_4, window_bounds = array<i64: 128, 8>}, {pipeline_mode = #tpu.pipeline_mode<synchronous>, transform_indices = @transform_5, window_bounds = array<i64: 1, 8>}, {transform_indices = @transform_6, window_bounds = array<i64: 16, 8>}]} {
    %c2_i32 = arith.constant 2 : i32
    %0 = arith.muli %arg0, %c2_i32 : i32
    %c0_i32 = arith.constant 0 : i32
    %1 = arith.addi %0, %c0_i32 : i32
    %2 = arith.index_cast %1 : i32 to index
    %c0 = arith.constant 0 : index
    %3 = memref.load %arg1[%2, %c0] : memref<4x8xi32, #tpu.memory_space<smem>>
    %c0_i32_0 = arith.constant 0 : i32
    %c15_i32 = arith.constant 15 : i32
    %4 = arith.maxsi %c0_i32_0, %3 : i32
    %5 = arith.minsi %c15_i32, %4 : i32
    %6 = arith.index_cast %5 : i32 to index
    %c0_1 = arith.constant 0 : index
    %7 = vector.load %arg2[%6, %c0_1] : memref<16x32xf32, #tpu.memory_space<vmem>>, vector<1x32xf32>
    %c2_i32_2 = arith.constant 2 : i32
    %8 = arith.muli %arg0, %c2_i32_2 : i32
    %c1_i32 = arith.constant 1 : i32
    %9 = arith.addi %8, %c1_i32 : i32
    %10 = arith.index_cast %9 : i32 to index
    %c0_3 = arith.constant 0 : index
    %11 = memref.load %arg1[%10, %c0_3] : memref<4x8xi32, #tpu.memory_space<smem>>
    %c0_i32_4 = arith.constant 0 : i32
    %c15_i32_5 = arith.constant 15 : i32
    %12 = arith.maxsi %c0_i32_4, %11 : i32
    %13 = arith.minsi %c15_i32_5, %12 : i32
    %14 = arith.index_cast %13 : i32 to index
    %c0_6 = arith.constant 0 : index
    %15 = vector.load %arg2[%14, %c0_6] : memref<16x32xf32, #tpu.memory_space<vmem>>, vector<1x32xf32>
    %c2_i32_7 = arith.constant 2 : i32
    %16 = arith.muli %arg0, %c2_i32_7 : i32
    %c0_i32_8 = arith.constant 0 : i32
    %17 = arith.addi %16, %c0_i32_8 : i32
    %18 = arith.index_cast %17 : i32 to index
    %c1 = arith.constant 1 : index
    %19 = memref.load %arg1[%18, %c1] : memref<4x8xi32, #tpu.memory_space<smem>>
    %c0_i32_9 = arith.constant 0 : i32
    %c15_i32_10 = arith.constant 15 : i32
    %20 = arith.maxsi %c0_i32_9, %19 : i32
    %21 = arith.minsi %c15_i32_10, %20 : i32
    %22 = arith.index_cast %21 : i32 to index
    %c0_11 = arith.constant 0 : index
    %23 = vector.load %arg2[%22, %c0_11] : memref<16x32xf32, #tpu.memory_space<vmem>>, vector<1x32xf32>
    %c2_i32_12 = arith.constant 2 : i32
    %24 = arith.muli %arg0, %c2_i32_12 : i32
    %c1_i32_13 = arith.constant 1 : i32
    %25 = arith.addi %24, %c1_i32_13 : i32
    %26 = arith.index_cast %25 : i32 to index
    %c1_14 = arith.constant 1 : index
    %27 = memref.load %arg1[%26, %c1_14] : memref<4x8xi32, #tpu.memory_space<smem>>
    %c0_i32_15 = arith.constant 0 : i32
    %c15_i32_16 = arith.constant 15 : i32
    %28 = arith.maxsi %c0_i32_15, %27 : i32
    %29 = arith.minsi %c15_i32_16, %28 : i32
    %30 = arith.index_cast %29 : i32 to index
    %c0_17 = arith.constant 0 : index
    %31 = vector.load %arg2[%30, %c0_17] : memref<16x32xf32, #tpu.memory_space<vmem>>, vector<1x32xf32>
    %c2_i32_18 = arith.constant 2 : i32
    %32 = arith.muli %arg0, %c2_i32_18 : i32
    %c0_i32_19 = arith.constant 0 : i32
    %33 = arith.addi %32, %c0_i32_19 : i32
    %34 = arith.index_cast %33 : i32 to index
    %c2 = arith.constant 2 : index
    %35 = memref.load %arg1[%34, %c2] : memref<4x8xi32, #tpu.memory_space<smem>>
    %c0_i32_20 = arith.constant 0 : i32
    %c15_i32_21 = arith.constant 15 : i32
    %36 = arith.maxsi %c0_i32_20, %35 : i32
    %37 = arith.minsi %c15_i32_21, %36 : i32
    %38 = arith.index_cast %37 : i32 to index
    %c0_22 = arith.constant 0 : index
    %39 = vector.load %arg2[%38, %c0_22] : memref<16x32xf32, #tpu.memory_space<vmem>>, vector<1x32xf32>
    %c2_i32_23 = arith.constant 2 : i32
    %40 = arith.muli %arg0, %c2_i32_23 : i32
    %c1_i32_24 = arith.constant 1 : i32
    %41 = arith.addi %40, %c1_i32_24 : i32
    %42 = arith.index_cast %41 : i32 to index
    %c2_25 = arith.constant 2 : index
    %43 = memref.load %arg1[%42, %c2_25] : memref<4x8xi32, #tpu.memory_space<smem>>
    %c0_i32_26 = arith.constant 0 : i32
    %c15_i32_27 = arith.constant 15 : i32
    %44 = arith.maxsi %c0_i32_26, %43 : i32
    %45 = arith.minsi %c15_i32_27, %44 : i32
    %46 = arith.index_cast %45 : i32 to index
    %c0_28 = arith.constant 0 : index
    %47 = vector.load %arg2[%46, %c0_28] : memref<16x32xf32, #tpu.memory_space<vmem>>, vector<1x32xf32>
    %c2_i32_29 = arith.constant 2 : i32
    %48 = arith.muli %arg0, %c2_i32_29 : i32
    %c0_i32_30 = arith.constant 0 : i32
    %49 = arith.addi %48, %c0_i32_30 : i32
    %50 = arith.index_cast %49 : i32 to index
    %c3 = arith.constant 3 : index
    %51 = memref.load %arg1[%50, %c3] : memref<4x8xi32, #tpu.memory_space<smem>>
    %c0_i32_31 = arith.constant 0 : i32
    %c15_i32_32 = arith.constant 15 : i32
    %52 = arith.maxsi %c0_i32_31, %51 : i32
    %53 = arith.minsi %c15_i32_32, %52 : i32
    %54 = arith.index_cast %53 : i32 to index
    %c0_33 = arith.constant 0 : index
    %55 = vector.load %arg2[%54, %c0_33] : memref<16x32xf32, #tpu.memory_space<vmem>>, vector<1x32xf32>
    %c2_i32_34 = arith.constant 2 : i32
    %56 = arith.muli %arg0, %c2_i32_34 : i32
    %c1_i32_35 = arith.constant 1 : i32
    %57 = arith.addi %56, %c1_i32_35 : i32
    %58 = arith.index_cast %57 : i32 to index
    %c3_36 = arith.constant 3 : index
    %59 = memref.load %arg1[%58, %c3_36] : memref<4x8xi32, #tpu.memory_space<smem>>
    %c0_i32_37 = arith.constant 0 : i32
    %c15_i32_38 = arith.constant 15 : i32
    %60 = arith.maxsi %c0_i32_37, %59 : i32
    %61 = arith.minsi %c15_i32_38, %60 : i32
    %62 = arith.index_cast %61 : i32 to index
    %c0_39 = arith.constant 0 : index
    %63 = vector.load %arg2[%62, %c0_39] : memref<16x32xf32, #tpu.memory_space<vmem>>, vector<1x32xf32>
    %c2_i32_40 = arith.constant 2 : i32
    %64 = arith.muli %arg0, %c2_i32_40 : i32
    %c0_i32_41 = arith.constant 0 : i32
    %65 = arith.addi %64, %c0_i32_41 : i32
    %66 = arith.index_cast %65 : i32 to index
    %c4 = arith.constant 4 : index
    %67 = memref.load %arg1[%66, %c4] : memref<4x8xi32, #tpu.memory_space<smem>>
    %c0_i32_42 = arith.constant 0 : i32
    %c15_i32_43 = arith.constant 15 : i32
    %68 = arith.maxsi %c0_i32_42, %67 : i32
    %69 = arith.minsi %c15_i32_43, %68 : i32
    %70 = arith.index_cast %69 : i32 to index
    %c0_44 = arith.constant 0 : index
    %71 = vector.load %arg2[%70, %c0_44] : memref<16x32xf32, #tpu.memory_space<vmem>>, vector<1x32xf32>
    %c2_i32_45 = arith.constant 2 : i32
    %72 = arith.muli %arg0, %c2_i32_45 : i32
    %c1_i32_46 = arith.constant 1 : i32
    %73 = arith.addi %72, %c1_i32_46 : i32
    %74 = arith.index_cast %73 : i32 to index
    %c4_47 = arith.constant 4 : index
    %75 = memref.load %arg1[%74, %c4_47] : memref<4x8xi32, #tpu.memory_space<smem>>
    %c0_i32_48 = arith.constant 0 : i32
    %c15_i32_49 = arith.constant 15 : i32
    %76 = arith.maxsi %c0_i32_48, %75 : i32
    %77 = arith.minsi %c15_i32_49, %76 : i32
    %78 = arith.index_cast %77 : i32 to index
    %c0_50 = arith.constant 0 : index
    %79 = vector.load %arg2[%78, %c0_50] : memref<16x32xf32, #tpu.memory_space<vmem>>, vector<1x32xf32>
    %c2_i32_51 = arith.constant 2 : i32
    %80 = arith.muli %arg0, %c2_i32_51 : i32
    %c0_i32_52 = arith.constant 0 : i32
    %81 = arith.addi %80, %c0_i32_52 : i32
    %82 = arith.index_cast %81 : i32 to index
    %c5 = arith.constant 5 : index
    %83 = memref.load %arg1[%82, %c5] : memref<4x8xi32, #tpu.memory_space<smem>>
    %c0_i32_53 = arith.constant 0 : i32
    %c15_i32_54 = arith.constant 15 : i32
    %84 = arith.maxsi %c0_i32_53, %83 : i32
    %85 = arith.minsi %c15_i32_54, %84 : i32
    %86 = arith.index_cast %85 : i32 to index
    %c0_55 = arith.constant 0 : index
    %87 = vector.load %arg2[%86, %c0_55] : memref<16x32xf32, #tpu.memory_space<vmem>>, vector<1x32xf32>
    %c2_i32_56 = arith.constant 2 : i32
    %88 = arith.muli %arg0, %c2_i32_56 : i32
    %c1_i32_57 = arith.constant 1 : i32
    %89 = arith.addi %88, %c1_i32_57 : i32
    %90 = arith.index_cast %89 : i32 to index
    %c5_58 = arith.constant 5 : index
    %91 = memref.load %arg1[%90, %c5_58] : memref<4x8xi32, #tpu.memory_space<smem>>
    %c0_i32_59 = arith.constant 0 : i32
    %c15_i32_60 = arith.constant 15 : i32
    %92 = arith.maxsi %c0_i32_59, %91 : i32
    %93 = arith.minsi %c15_i32_60, %92 : i32
    %94 = arith.index_cast %93 : i32 to index
    %c0_61 = arith.constant 0 : index
    %95 = vector.load %arg2[%94, %c0_61] : memref<16x32xf32, #tpu.memory_space<vmem>>, vector<1x32xf32>
    %c2_i32_62 = arith.constant 2 : i32
    %96 = arith.muli %arg0, %c2_i32_62 : i32
    %c0_i32_63 = arith.constant 0 : i32
    %97 = arith.addi %96, %c0_i32_63 : i32
    %98 = arith.index_cast %97 : i32 to index
    %c6 = arith.constant 6 : index
    %99 = memref.load %arg1[%98, %c6] : memref<4x8xi32, #tpu.memory_space<smem>>
    %c0_i32_64 = arith.constant 0 : i32
    %c15_i32_65 = arith.constant 15 : i32
    %100 = arith.maxsi %c0_i32_64, %99 : i32
    %101 = arith.minsi %c15_i32_65, %100 : i32
    %102 = arith.index_cast %101 : i32 to index
    %c0_66 = arith.constant 0 : index
    %103 = vector.load %arg2[%102, %c0_66] : memref<16x32xf32, #tpu.memory_space<vmem>>, vector<1x32xf32>
    %c2_i32_67 = arith.constant 2 : i32
    %104 = arith.muli %arg0, %c2_i32_67 : i32
    %c1_i32_68 = arith.constant 1 : i32
    %105 = arith.addi %104, %c1_i32_68 : i32
    %106 = arith.index_cast %105 : i32 to index
    %c6_69 = arith.constant 6 : index
    %107 = memref.load %arg1[%106, %c6_69] : memref<4x8xi32, #tpu.memory_space<smem>>
    %c0_i32_70 = arith.constant 0 : i32
    %c15_i32_71 = arith.constant 15 : i32
    %108 = arith.maxsi %c0_i32_70, %107 : i32
    %109 = arith.minsi %c15_i32_71, %108 : i32
    %110 = arith.index_cast %109 : i32 to index
    %c0_72 = arith.constant 0 : index
    %111 = vector.load %arg2[%110, %c0_72] : memref<16x32xf32, #tpu.memory_space<vmem>>, vector<1x32xf32>
    %c2_i32_73 = arith.constant 2 : i32
    %112 = arith.muli %arg0, %c2_i32_73 : i32
    %c0_i32_74 = arith.constant 0 : i32
    %113 = arith.addi %112, %c0_i32_74 : i32
    %114 = arith.index_cast %113 : i32 to index
    %c7 = arith.constant 7 : index
    %115 = memref.load %arg1[%114, %c7] : memref<4x8xi32, #tpu.memory_space<smem>>
    %c0_i32_75 = arith.constant 0 : i32
    %c15_i32_76 = arith.constant 15 : i32
    %116 = arith.maxsi %c0_i32_75, %115 : i32
    %117 = arith.minsi %c15_i32_76, %116 : i32
    %118 = arith.index_cast %117 : i32 to index
    %c0_77 = arith.constant 0 : index
    %119 = vector.load %arg2[%118, %c0_77] : memref<16x32xf32, #tpu.memory_space<vmem>>, vector<1x32xf32>
    %c2_i32_78 = arith.constant 2 : i32
    %120 = arith.muli %arg0, %c2_i32_78 : i32
    %c1_i32_79 = arith.constant 1 : i32
    %121 = arith.addi %120, %c1_i32_79 : i32
    %122 = arith.index_cast %121 : i32 to index
    %c7_80 = arith.constant 7 : index
    %123 = memref.load %arg1[%122, %c7_80] : memref<4x8xi32, #tpu.memory_space<smem>>
    %c0_i32_81 = arith.constant 0 : i32
    %c15_i32_82 = arith.constant 15 : i32
    %124 = arith.maxsi %c0_i32_81, %123 : i32
    %125 = arith.minsi %c15_i32_82, %124 : i32
    %126 = arith.index_cast %125 : i32 to index
    %c0_83 = arith.constant 0 : index
    %127 = vector.load %arg2[%126, %c0_83] : memref<16x32xf32, #tpu.memory_space<vmem>>, vector<1x32xf32>
    %128 = tpu.concatenate %7, %15, %23, %31, %39, %47, %55, %63, %71, %79, %87, %95, %103, %111, %119, %127 in 0 : vector<1x32xf32>, vector<1x32xf32>, vector<1x32xf32>, vector<1x32xf32>, vector<1x32xf32>, vector<1x32xf32>, vector<1x32xf32>, vector<1x32xf32>, vector<1x32xf32>, vector<1x32xf32>, vector<1x32xf32>, vector<1x32xf32>, vector<1x32xf32>, vector<1x32xf32>, vector<1x32xf32>, vector<1x32xf32> -> vector<16x32xf32>
    %129 = arith.truncf %128 : vector<16x32xf32> to vector<16x32xbf16>
    %c0_84 = arith.constant 0 : index
    %c0_85 = arith.constant 0 : index
    %130 = vector.load %arg3[%c0_84, %c0_85] : memref<32x512xbf16, #tpu.memory_space<vmem>>, vector<32x512xbf16>
    %cst = arith.constant dense<0.000000e+00> : vector<16x512xf32>
    %131 = tpu.matmul %129, %130, %cst {dimension_numbers = #tpu.dot_dimension_numbers<[1], [0], [0], [1], [0, 0, 1, 1], [], []>} : vector<16x32xbf16>, vector<32x512xbf16>, vector<16x512xf32> -> vector<16x512xf32>
    %c0_86 = arith.constant 0 : index
    %c0_87 = arith.constant 0 : index
    %132 = vector.load %arg5[%c0_86, %c0_87] : memref<1x512xf32, #tpu.memory_space<vmem>>, vector<1x512xf32>
    %133 = vector.broadcast %132 : vector<1x512xf32> to vector<16x512xf32>
    %134 = arith.addf %131, %133 : vector<16x512xf32>
    %c0_88 = arith.constant 0 : index
    %c0_89 = arith.constant 0 : index
    %135 = vector.load %arg4[%c0_88, %c0_89] : memref<128x512xbf16, #tpu.memory_space<vmem>>, vector<128x512xbf16>
    %cst_90 = arith.constant 0.000000e+00 : f32
    %136 = vector.broadcast %cst_90 : f32 to vector<2x128xf32>
    %cst_91 = arith.constant 0.000000e+00 : f32
    %137 = vector.broadcast %cst_91 : f32 to vector<2x128xf32>
    %138 = arith.truncf %136 : vector<2x128xf32> to vector<2x128xbf16>
    %cst_92 = arith.constant dense<0.000000e+00> : vector<2x512xf32>
    %139 = tpu.matmul %138, %135, %cst_92 {dimension_numbers = #tpu.dot_dimension_numbers<[1], [0], [0], [1], [0, 0, 1, 1], [], []>} : vector<2x128xbf16>, vector<128x512xbf16>, vector<2x512xf32> -> vector<2x512xf32>
    %140 = vector.extract_strided_slice %134 {offsets = [0, 0], sizes = [2, 512], strides = [1, 1]} : vector<16x512xf32> to vector<2x512xf32>
    %141 = arith.addf %139, %140 : vector<2x512xf32>
    %142 = vector.extract_strided_slice %141 {offsets = [0, 0], sizes = [2, 128], strides = [1, 1]} : vector<2x512xf32> to vector<2x128xf32>
    %143 = arith.negf %142 : vector<2x128xf32>
    %144 = math.exp %143 : vector<2x128xf32>
    %cst_93 = arith.constant 1.000000e+00 : f32
    %145 = vector.broadcast %cst_93 : f32 to vector<2x128xf32>
    %146 = arith.addf %145, %144 : vector<2x128xf32>
    %147 = arith.divf %145, %146 : vector<2x128xf32>
    %148 = vector.extract_strided_slice %141 {offsets = [0, 128], sizes = [2, 128], strides = [1, 1]} : vector<2x512xf32> to vector<2x128xf32>
    %149 = arith.negf %148 : vector<2x128xf32>
    %150 = math.exp %149 : vector<2x128xf32>
    %cst_94 = arith.constant 1.000000e+00 : f32
    %151 = vector.broadcast %cst_94 : f32 to vector<2x128xf32>
    %152 = arith.addf %151, %150 : vector<2x128xf32>
    %153 = arith.divf %151, %152 : vector<2x128xf32>
    %154 = vector.extract_strided_slice %141 {offsets = [0, 256], sizes = [2, 128], strides = [1, 1]} : vector<2x512xf32> to vector<2x128xf32>
    %155 = math.tanh %154 : vector<2x128xf32>
    %156 = vector.extract_strided_slice %141 {offsets = [0, 384], sizes = [2, 128], strides = [1, 1]} : vector<2x512xf32> to vector<2x128xf32>
    %157 = arith.negf %156 : vector<2x128xf32>
    %158 = math.exp %157 : vector<2x128xf32>
    %cst_95 = arith.constant 1.000000e+00 : f32
    %159 = vector.broadcast %cst_95 : f32 to vector<2x128xf32>
    %160 = arith.addf %159, %158 : vector<2x128xf32>
    %161 = arith.divf %159, %160 : vector<2x128xf32>
    %162 = arith.mulf %153, %137 : vector<2x128xf32>
    %163 = arith.mulf %147, %155 : vector<2x128xf32>
    %164 = arith.addf %162, %163 : vector<2x128xf32>
    %165 = math.tanh %164 : vector<2x128xf32>
    %166 = arith.mulf %161, %165 : vector<2x128xf32>
    %167 = arith.truncf %166 : vector<2x128xf32> to vector<2x128xbf16>
    %cst_96 = arith.constant dense<0.000000e+00> : vector<2x512xf32>
    %168 = tpu.matmul %167, %135, %cst_96 {dimension_numbers = #tpu.dot_dimension_numbers<[1], [0], [0], [1], [0, 0, 1, 1], [], []>} : vector<2x128xbf16>, vector<128x512xbf16>, vector<2x512xf32> -> vector<2x512xf32>
    %169 = vector.extract_strided_slice %134 {offsets = [2, 0], sizes = [2, 512], strides = [1, 1]} : vector<16x512xf32> to vector<2x512xf32>
    %170 = arith.addf %168, %169 : vector<2x512xf32>
    %171 = vector.extract_strided_slice %170 {offsets = [0, 0], sizes = [2, 128], strides = [1, 1]} : vector<2x512xf32> to vector<2x128xf32>
    %172 = arith.negf %171 : vector<2x128xf32>
    %173 = math.exp %172 : vector<2x128xf32>
    %cst_97 = arith.constant 1.000000e+00 : f32
    %174 = vector.broadcast %cst_97 : f32 to vector<2x128xf32>
    %175 = arith.addf %174, %173 : vector<2x128xf32>
    %176 = arith.divf %174, %175 : vector<2x128xf32>
    %177 = vector.extract_strided_slice %170 {offsets = [0, 128], sizes = [2, 128], strides = [1, 1]} : vector<2x512xf32> to vector<2x128xf32>
    %178 = arith.negf %177 : vector<2x128xf32>
    %179 = math.exp %178 : vector<2x128xf32>
    %cst_98 = arith.constant 1.000000e+00 : f32
    %180 = vector.broadcast %cst_98 : f32 to vector<2x128xf32>
    %181 = arith.addf %180, %179 : vector<2x128xf32>
    %182 = arith.divf %180, %181 : vector<2x128xf32>
    %183 = vector.extract_strided_slice %170 {offsets = [0, 256], sizes = [2, 128], strides = [1, 1]} : vector<2x512xf32> to vector<2x128xf32>
    %184 = math.tanh %183 : vector<2x128xf32>
    %185 = vector.extract_strided_slice %170 {offsets = [0, 384], sizes = [2, 128], strides = [1, 1]} : vector<2x512xf32> to vector<2x128xf32>
    %186 = arith.negf %185 : vector<2x128xf32>
    %187 = math.exp %186 : vector<2x128xf32>
    %cst_99 = arith.constant 1.000000e+00 : f32
    %188 = vector.broadcast %cst_99 : f32 to vector<2x128xf32>
    %189 = arith.addf %188, %187 : vector<2x128xf32>
    %190 = arith.divf %188, %189 : vector<2x128xf32>
    %191 = arith.mulf %182, %164 : vector<2x128xf32>
    %192 = arith.mulf %176, %184 : vector<2x128xf32>
    %193 = arith.addf %191, %192 : vector<2x128xf32>
    %194 = math.tanh %193 : vector<2x128xf32>
    %195 = arith.mulf %190, %194 : vector<2x128xf32>
    %196 = arith.truncf %195 : vector<2x128xf32> to vector<2x128xbf16>
    %cst_100 = arith.constant dense<0.000000e+00> : vector<2x512xf32>
    %197 = tpu.matmul %196, %135, %cst_100 {dimension_numbers = #tpu.dot_dimension_numbers<[1], [0], [0], [1], [0, 0, 1, 1], [], []>} : vector<2x128xbf16>, vector<128x512xbf16>, vector<2x512xf32> -> vector<2x512xf32>
    %198 = vector.extract_strided_slice %134 {offsets = [4, 0], sizes = [2, 512], strides = [1, 1]} : vector<16x512xf32> to vector<2x512xf32>
    %199 = arith.addf %197, %198 : vector<2x512xf32>
    %200 = vector.extract_strided_slice %199 {offsets = [0, 0], sizes = [2, 128], strides = [1, 1]} : vector<2x512xf32> to vector<2x128xf32>
    %201 = arith.negf %200 : vector<2x128xf32>
    %202 = math.exp %201 : vector<2x128xf32>
    %cst_101 = arith.constant 1.000000e+00 : f32
    %203 = vector.broadcast %cst_101 : f32 to vector<2x128xf32>
    %204 = arith.addf %203, %202 : vector<2x128xf32>
    %205 = arith.divf %203, %204 : vector<2x128xf32>
    %206 = vector.extract_strided_slice %199 {offsets = [0, 128], sizes = [2, 128], strides = [1, 1]} : vector<2x512xf32> to vector<2x128xf32>
    %207 = arith.negf %206 : vector<2x128xf32>
    %208 = math.exp %207 : vector<2x128xf32>
    %cst_102 = arith.constant 1.000000e+00 : f32
    %209 = vector.broadcast %cst_102 : f32 to vector<2x128xf32>
    %210 = arith.addf %209, %208 : vector<2x128xf32>
    %211 = arith.divf %209, %210 : vector<2x128xf32>
    %212 = vector.extract_strided_slice %199 {offsets = [0, 256], sizes = [2, 128], strides = [1, 1]} : vector<2x512xf32> to vector<2x128xf32>
    %213 = math.tanh %212 : vector<2x128xf32>
    %214 = vector.extract_strided_slice %199 {offsets = [0, 384], sizes = [2, 128], strides = [1, 1]} : vector<2x512xf32> to vector<2x128xf32>
    %215 = arith.negf %214 : vector<2x128xf32>
    %216 = math.exp %215 : vector<2x128xf32>
    %cst_103 = arith.constant 1.000000e+00 : f32
    %217 = vector.broadcast %cst_103 : f32 to vector<2x128xf32>
    %218 = arith.addf %217, %216 : vector<2x128xf32>
    %219 = arith.divf %217, %218 : vector<2x128xf32>
    %220 = arith.mulf %211, %193 : vector<2x128xf32>
    %221 = arith.mulf %205, %213 : vector<2x128xf32>
    %222 = arith.addf %220, %221 : vector<2x128xf32>
    %223 = math.tanh %222 : vector<2x128xf32>
    %224 = arith.mulf %219, %223 : vector<2x128xf32>
    %225 = arith.truncf %224 : vector<2x128xf32> to vector<2x128xbf16>
    %cst_104 = arith.constant dense<0.000000e+00> : vector<2x512xf32>
    %226 = tpu.matmul %225, %135, %cst_104 {dimension_numbers = #tpu.dot_dimension_numbers<[1], [0], [0], [1], [0, 0, 1, 1], [], []>} : vector<2x128xbf16>, vector<128x512xbf16>, vector<2x512xf32> -> vector<2x512xf32>
    %227 = vector.extract_strided_slice %134 {offsets = [6, 0], sizes = [2, 512], strides = [1, 1]} : vector<16x512xf32> to vector<2x512xf32>
    %228 = arith.addf %226, %227 : vector<2x512xf32>
    %229 = vector.extract_strided_slice %228 {offsets = [0, 0], sizes = [2, 128], strides = [1, 1]} : vector<2x512xf32> to vector<2x128xf32>
    %230 = arith.negf %229 : vector<2x128xf32>
    %231 = math.exp %230 : vector<2x128xf32>
    %cst_105 = arith.constant 1.000000e+00 : f32
    %232 = vector.broadcast %cst_105 : f32 to vector<2x128xf32>
    %233 = arith.addf %232, %231 : vector<2x128xf32>
    %234 = arith.divf %232, %233 : vector<2x128xf32>
    %235 = vector.extract_strided_slice %228 {offsets = [0, 128], sizes = [2, 128], strides = [1, 1]} : vector<2x512xf32> to vector<2x128xf32>
    %236 = arith.negf %235 : vector<2x128xf32>
    %237 = math.exp %236 : vector<2x128xf32>
    %cst_106 = arith.constant 1.000000e+00 : f32
    %238 = vector.broadcast %cst_106 : f32 to vector<2x128xf32>
    %239 = arith.addf %238, %237 : vector<2x128xf32>
    %240 = arith.divf %238, %239 : vector<2x128xf32>
    %241 = vector.extract_strided_slice %228 {offsets = [0, 256], sizes = [2, 128], strides = [1, 1]} : vector<2x512xf32> to vector<2x128xf32>
    %242 = math.tanh %241 : vector<2x128xf32>
    %243 = vector.extract_strided_slice %228 {offsets = [0, 384], sizes = [2, 128], strides = [1, 1]} : vector<2x512xf32> to vector<2x128xf32>
    %244 = arith.negf %243 : vector<2x128xf32>
    %245 = math.exp %244 : vector<2x128xf32>
    %cst_107 = arith.constant 1.000000e+00 : f32
    %246 = vector.broadcast %cst_107 : f32 to vector<2x128xf32>
    %247 = arith.addf %246, %245 : vector<2x128xf32>
    %248 = arith.divf %246, %247 : vector<2x128xf32>
    %249 = arith.mulf %240, %222 : vector<2x128xf32>
    %250 = arith.mulf %234, %242 : vector<2x128xf32>
    %251 = arith.addf %249, %250 : vector<2x128xf32>
    %252 = math.tanh %251 : vector<2x128xf32>
    %253 = arith.mulf %248, %252 : vector<2x128xf32>
    %254 = arith.truncf %253 : vector<2x128xf32> to vector<2x128xbf16>
    %cst_108 = arith.constant dense<0.000000e+00> : vector<2x512xf32>
    %255 = tpu.matmul %254, %135, %cst_108 {dimension_numbers = #tpu.dot_dimension_numbers<[1], [0], [0], [1], [0, 0, 1, 1], [], []>} : vector<2x128xbf16>, vector<128x512xbf16>, vector<2x512xf32> -> vector<2x512xf32>
    %256 = vector.extract_strided_slice %134 {offsets = [8, 0], sizes = [2, 512], strides = [1, 1]} : vector<16x512xf32> to vector<2x512xf32>
    %257 = arith.addf %255, %256 : vector<2x512xf32>
    %258 = vector.extract_strided_slice %257 {offsets = [0, 0], sizes = [2, 128], strides = [1, 1]} : vector<2x512xf32> to vector<2x128xf32>
    %259 = arith.negf %258 : vector<2x128xf32>
    %260 = math.exp %259 : vector<2x128xf32>
    %cst_109 = arith.constant 1.000000e+00 : f32
    %261 = vector.broadcast %cst_109 : f32 to vector<2x128xf32>
    %262 = arith.addf %261, %260 : vector<2x128xf32>
    %263 = arith.divf %261, %262 : vector<2x128xf32>
    %264 = vector.extract_strided_slice %257 {offsets = [0, 128], sizes = [2, 128], strides = [1, 1]} : vector<2x512xf32> to vector<2x128xf32>
    %265 = arith.negf %264 : vector<2x128xf32>
    %266 = math.exp %265 : vector<2x128xf32>
    %cst_110 = arith.constant 1.000000e+00 : f32
    %267 = vector.broadcast %cst_110 : f32 to vector<2x128xf32>
    %268 = arith.addf %267, %266 : vector<2x128xf32>
    %269 = arith.divf %267, %268 : vector<2x128xf32>
    %270 = vector.extract_strided_slice %257 {offsets = [0, 256], sizes = [2, 128], strides = [1, 1]} : vector<2x512xf32> to vector<2x128xf32>
    %271 = math.tanh %270 : vector<2x128xf32>
    %272 = vector.extract_strided_slice %257 {offsets = [0, 384], sizes = [2, 128], strides = [1, 1]} : vector<2x512xf32> to vector<2x128xf32>
    %273 = arith.negf %272 : vector<2x128xf32>
    %274 = math.exp %273 : vector<2x128xf32>
    %cst_111 = arith.constant 1.000000e+00 : f32
    %275 = vector.broadcast %cst_111 : f32 to vector<2x128xf32>
    %276 = arith.addf %275, %274 : vector<2x128xf32>
    %277 = arith.divf %275, %276 : vector<2x128xf32>
    %278 = arith.mulf %269, %251 : vector<2x128xf32>
    %279 = arith.mulf %263, %271 : vector<2x128xf32>
    %280 = arith.addf %278, %279 : vector<2x128xf32>
    %281 = math.tanh %280 : vector<2x128xf32>
    %282 = arith.mulf %277, %281 : vector<2x128xf32>
    %283 = arith.truncf %282 : vector<2x128xf32> to vector<2x128xbf16>
    %cst_112 = arith.constant dense<0.000000e+00> : vector<2x512xf32>
    %284 = tpu.matmul %283, %135, %cst_112 {dimension_numbers = #tpu.dot_dimension_numbers<[1], [0], [0], [1], [0, 0, 1, 1], [], []>} : vector<2x128xbf16>, vector<128x512xbf16>, vector<2x512xf32> -> vector<2x512xf32>
    %285 = vector.extract_strided_slice %134 {offsets = [10, 0], sizes = [2, 512], strides = [1, 1]} : vector<16x512xf32> to vector<2x512xf32>
    %286 = arith.addf %284, %285 : vector<2x512xf32>
    %287 = vector.extract_strided_slice %286 {offsets = [0, 0], sizes = [2, 128], strides = [1, 1]} : vector<2x512xf32> to vector<2x128xf32>
    %288 = arith.negf %287 : vector<2x128xf32>
    %289 = math.exp %288 : vector<2x128xf32>
    %cst_113 = arith.constant 1.000000e+00 : f32
    %290 = vector.broadcast %cst_113 : f32 to vector<2x128xf32>
    %291 = arith.addf %290, %289 : vector<2x128xf32>
    %292 = arith.divf %290, %291 : vector<2x128xf32>
    %293 = vector.extract_strided_slice %286 {offsets = [0, 128], sizes = [2, 128], strides = [1, 1]} : vector<2x512xf32> to vector<2x128xf32>
    %294 = arith.negf %293 : vector<2x128xf32>
    %295 = math.exp %294 : vector<2x128xf32>
    %cst_114 = arith.constant 1.000000e+00 : f32
    %296 = vector.broadcast %cst_114 : f32 to vector<2x128xf32>
    %297 = arith.addf %296, %295 : vector<2x128xf32>
    %298 = arith.divf %296, %297 : vector<2x128xf32>
    %299 = vector.extract_strided_slice %286 {offsets = [0, 256], sizes = [2, 128], strides = [1, 1]} : vector<2x512xf32> to vector<2x128xf32>
    %300 = math.tanh %299 : vector<2x128xf32>
    %301 = vector.extract_strided_slice %286 {offsets = [0, 384], sizes = [2, 128], strides = [1, 1]} : vector<2x512xf32> to vector<2x128xf32>
    %302 = arith.negf %301 : vector<2x128xf32>
    %303 = math.exp %302 : vector<2x128xf32>
    %cst_115 = arith.constant 1.000000e+00 : f32
    %304 = vector.broadcast %cst_115 : f32 to vector<2x128xf32>
    %305 = arith.addf %304, %303 : vector<2x128xf32>
    %306 = arith.divf %304, %305 : vector<2x128xf32>
    %307 = arith.mulf %298, %280 : vector<2x128xf32>
    %308 = arith.mulf %292, %300 : vector<2x128xf32>
    %309 = arith.addf %307, %308 : vector<2x128xf32>
    %310 = math.tanh %309 : vector<2x128xf32>
    %311 = arith.mulf %306, %310 : vector<2x128xf32>
    %312 = arith.truncf %311 : vector<2x128xf32> to vector<2x128xbf16>
    %cst_116 = arith.constant dense<0.000000e+00> : vector<2x512xf32>
    %313 = tpu.matmul %312, %135, %cst_116 {dimension_numbers = #tpu.dot_dimension_numbers<[1], [0], [0], [1], [0, 0, 1, 1], [], []>} : vector<2x128xbf16>, vector<128x512xbf16>, vector<2x512xf32> -> vector<2x512xf32>
    %314 = vector.extract_strided_slice %134 {offsets = [12, 0], sizes = [2, 512], strides = [1, 1]} : vector<16x512xf32> to vector<2x512xf32>
    %315 = arith.addf %313, %314 : vector<2x512xf32>
    %316 = vector.extract_strided_slice %315 {offsets = [0, 0], sizes = [2, 128], strides = [1, 1]} : vector<2x512xf32> to vector<2x128xf32>
    %317 = arith.negf %316 : vector<2x128xf32>
    %318 = math.exp %317 : vector<2x128xf32>
    %cst_117 = arith.constant 1.000000e+00 : f32
    %319 = vector.broadcast %cst_117 : f32 to vector<2x128xf32>
    %320 = arith.addf %319, %318 : vector<2x128xf32>
    %321 = arith.divf %319, %320 : vector<2x128xf32>
    %322 = vector.extract_strided_slice %315 {offsets = [0, 128], sizes = [2, 128], strides = [1, 1]} : vector<2x512xf32> to vector<2x128xf32>
    %323 = arith.negf %322 : vector<2x128xf32>
    %324 = math.exp %323 : vector<2x128xf32>
    %cst_118 = arith.constant 1.000000e+00 : f32
    %325 = vector.broadcast %cst_118 : f32 to vector<2x128xf32>
    %326 = arith.addf %325, %324 : vector<2x128xf32>
    %327 = arith.divf %325, %326 : vector<2x128xf32>
    %328 = vector.extract_strided_slice %315 {offsets = [0, 256], sizes = [2, 128], strides = [1, 1]} : vector<2x512xf32> to vector<2x128xf32>
    %329 = math.tanh %328 : vector<2x128xf32>
    %330 = vector.extract_strided_slice %315 {offsets = [0, 384], sizes = [2, 128], strides = [1, 1]} : vector<2x512xf32> to vector<2x128xf32>
    %331 = arith.negf %330 : vector<2x128xf32>
    %332 = math.exp %331 : vector<2x128xf32>
    %cst_119 = arith.constant 1.000000e+00 : f32
    %333 = vector.broadcast %cst_119 : f32 to vector<2x128xf32>
    %334 = arith.addf %333, %332 : vector<2x128xf32>
    %335 = arith.divf %333, %334 : vector<2x128xf32>
    %336 = arith.mulf %327, %309 : vector<2x128xf32>
    %337 = arith.mulf %321, %329 : vector<2x128xf32>
    %338 = arith.addf %336, %337 : vector<2x128xf32>
    %339 = math.tanh %338 : vector<2x128xf32>
    %340 = arith.mulf %335, %339 : vector<2x128xf32>
    %341 = arith.truncf %340 : vector<2x128xf32> to vector<2x128xbf16>
    %cst_120 = arith.constant dense<0.000000e+00> : vector<2x512xf32>
    %342 = tpu.matmul %341, %135, %cst_120 {dimension_numbers = #tpu.dot_dimension_numbers<[1], [0], [0], [1], [0, 0, 1, 1], [], []>} : vector<2x128xbf16>, vector<128x512xbf16>, vector<2x512xf32> -> vector<2x512xf32>
    %343 = vector.extract_strided_slice %134 {offsets = [14, 0], sizes = [2, 512], strides = [1, 1]} : vector<16x512xf32> to vector<2x512xf32>
    %344 = arith.addf %342, %343 : vector<2x512xf32>
    %345 = vector.extract_strided_slice %344 {offsets = [0, 0], sizes = [2, 128], strides = [1, 1]} : vector<2x512xf32> to vector<2x128xf32>
    %346 = arith.negf %345 : vector<2x128xf32>
    %347 = math.exp %346 : vector<2x128xf32>
    %cst_121 = arith.constant 1.000000e+00 : f32
    %348 = vector.broadcast %cst_121 : f32 to vector<2x128xf32>
    %349 = arith.addf %348, %347 : vector<2x128xf32>
    %350 = arith.divf %348, %349 : vector<2x128xf32>
    %351 = vector.extract_strided_slice %344 {offsets = [0, 128], sizes = [2, 128], strides = [1, 1]} : vector<2x512xf32> to vector<2x128xf32>
    %352 = arith.negf %351 : vector<2x128xf32>
    %353 = math.exp %352 : vector<2x128xf32>
    %cst_122 = arith.constant 1.000000e+00 : f32
    %354 = vector.broadcast %cst_122 : f32 to vector<2x128xf32>
    %355 = arith.addf %354, %353 : vector<2x128xf32>
    %356 = arith.divf %354, %355 : vector<2x128xf32>
    %357 = vector.extract_strided_slice %344 {offsets = [0, 256], sizes = [2, 128], strides = [1, 1]} : vector<2x512xf32> to vector<2x128xf32>
    %358 = math.tanh %357 : vector<2x128xf32>
    %359 = vector.extract_strided_slice %344 {offsets = [0, 384], sizes = [2, 128], strides = [1, 1]} : vector<2x512xf32> to vector<2x128xf32>
    %360 = arith.negf %359 : vector<2x128xf32>
    %361 = math.exp %360 : vector<2x128xf32>
    %cst_123 = arith.constant 1.000000e+00 : f32
    %362 = vector.broadcast %cst_123 : f32 to vector<2x128xf32>
    %363 = arith.addf %362, %361 : vector<2x128xf32>
    %364 = arith.divf %362, %363 : vector<2x128xf32>
    %365 = arith.mulf %356, %338 : vector<2x128xf32>
    %366 = arith.mulf %350, %358 : vector<2x128xf32>
    %367 = arith.addf %365, %366 : vector<2x128xf32>
    %368 = math.tanh %367 : vector<2x128xf32>
    %369 = arith.mulf %364, %368 : vector<2x128xf32>
    %370 = tpu.concatenate %166, %195, %224, %253, %282, %311, %340, %369 in 0 : vector<2x128xf32>, vector<2x128xf32>, vector<2x128xf32>, vector<2x128xf32>, vector<2x128xf32>, vector<2x128xf32>, vector<2x128xf32>, vector<2x128xf32> -> vector<16x128xf32>
    %371 = arith.truncf %370 : vector<16x128xf32> to vector<16x128xbf16>
    %c0_124 = arith.constant 0 : index
    %c0_125 = arith.constant 0 : index
    %372 = vector.load %arg6[%c0_124, %c0_125] : memref<128x8xbf16, #tpu.memory_space<vmem>>, vector<128x8xbf16>
    %cst_126 = arith.constant dense<0.000000e+00> : vector<16x8xf32>
    %373 = tpu.matmul %371, %372, %cst_126 {dimension_numbers = #tpu.dot_dimension_numbers<[1], [0], [0], [1], [0, 0, 1, 1], [], []>} : vector<16x128xbf16>, vector<128x8xbf16>, vector<16x8xf32> -> vector<16x8xf32>
    %c0_127 = arith.constant 0 : index
    %c0_128 = arith.constant 0 : index
    %374 = vector.load %arg7[%c0_127, %c0_128] : memref<1x8xf32, #tpu.memory_space<vmem>>, vector<1x8xf32>
    %375 = vector.broadcast %374 : vector<1x8xf32> to vector<16x8xf32>
    %376 = arith.addf %373, %375 : vector<16x8xf32>
    %cst_129 = arith.constant dense<0xFF800000> : vector<16xf32>
    %377 = vector.multi_reduction <maximumf>, %376, %cst_129 [1] : vector<16x8xf32> to vector<16xf32>
    %378 = vector.shape_cast %377 : vector<16xf32> to vector<16x1xf32>
    %379 = vector.broadcast %378 : vector<16x1xf32> to vector<16x8xf32>
    %380 = arith.subf %376, %379 : vector<16x8xf32>
    %381 = math.exp %380 : vector<16x8xf32>
    %cst_130 = arith.constant dense<0.000000e+00> : vector<16xf32>
    %382 = vector.multi_reduction <add>, %381, %cst_130 [1] : vector<16x8xf32> to vector<16xf32>
    %383 = vector.shape_cast %382 : vector<16xf32> to vector<16x1xf32>
    %384 = math.log %383 : vector<16x1xf32>
    %385 = arith.addf %378, %384 : vector<16x1xf32>
    %386 = vector.broadcast %385 : vector<16x1xf32> to vector<16x8xf32>
    %387 = arith.subf %376, %386 : vector<16x8xf32>
    %c0_131 = arith.constant 0 : index
    %c0_132 = arith.constant 0 : index
    %388 = vector.load %arg8[%c0_131, %c0_132] : memref<16x8xf32, #tpu.memory_space<vmem>>, vector<16x8xf32>
    tpu.vector_store %arg8[%c0_131, %c0_132], %387 {strides = array<i32>} : memref<16x8xf32, #tpu.memory_space<vmem>>, vector<16x8xf32>,
    return
  }
  func.func @transform_0(%arg0: i32, %arg1: memref<4x8xi32, #tpu.memory_space<smem>>) -> (i32, i32) {
    %c0_i32 = arith.constant 0 : i32
    %c0_i32_0 = arith.constant 0 : i32
    %c0_i32_1 = arith.constant 0 : i32
    return %c0_i32, %c0_i32_0 : i32, i32
  }
  func.func @transform_1(%arg0: i32, %arg1: memref<4x8xi32, #tpu.memory_space<smem>>) -> (i32, i32) {
    %c0_i32 = arith.constant 0 : i32
    %c0_i32_0 = arith.constant 0 : i32
    %c0_i32_1 = arith.constant 0 : i32
    return %c0_i32, %c0_i32_0 : i32, i32
  }
  func.func @transform_2(%arg0: i32, %arg1: memref<4x8xi32, #tpu.memory_space<smem>>) -> (i32, i32) {
    %c0_i32 = arith.constant 0 : i32
    %c0_i32_0 = arith.constant 0 : i32
    %c0_i32_1 = arith.constant 0 : i32
    return %c0_i32, %c0_i32_0 : i32, i32
  }
  func.func @transform_3(%arg0: i32, %arg1: memref<4x8xi32, #tpu.memory_space<smem>>) -> (i32, i32) {
    %c0_i32 = arith.constant 0 : i32
    %c0_i32_0 = arith.constant 0 : i32
    %c0_i32_1 = arith.constant 0 : i32
    return %c0_i32, %c0_i32_0 : i32, i32
  }
  func.func @transform_4(%arg0: i32, %arg1: memref<4x8xi32, #tpu.memory_space<smem>>) -> (i32, i32) {
    %c0_i32 = arith.constant 0 : i32
    %c0_i32_0 = arith.constant 0 : i32
    %c0_i32_1 = arith.constant 0 : i32
    return %c0_i32, %c0_i32_0 : i32, i32
  }
  func.func @transform_5(%arg0: i32, %arg1: memref<4x8xi32, #tpu.memory_space<smem>>) -> (i32, i32) {
    %c0_i32 = arith.constant 0 : i32
    %c0_i32_0 = arith.constant 0 : i32
    %c0_i32_1 = arith.constant 0 : i32
    return %c0_i32, %c0_i32_0 : i32, i32
  }
  func.func @transform_6(%arg0: i32, %arg1: memref<4x8xi32, #tpu.memory_space<smem>>) -> (i32, i32) {
    %c0_i32 = arith.constant 0 : i32
    %c0_i32_0 = arith.constant 0 : i32
    return %arg0, %c0_i32 : i32, i32
  }
}

</mosaic_0001>

<llo_original>
// kernel: tpu_custom_call.1
$region0: #{tpu_custom_call.1}
  #allocation0 [shape = 'u32[]', space=smem, size = 0x4, offset = 0x4, fixed_abs, tag = 'smem constant byte address 0x4 - core index']
  #allocation1 [shape = 'u32[144,128]{1,0:T(1,128)}', space=vmem, size = 0x12000, scoped, tag = 'internal scratch']
  #allocation2 [shape = 's32[1]{0}', space=sflag, size = 0x4, scoped, tag = 'scoped memory for tpu_custom_call.1']
  #allocation3 [shape = 'u8[2048]{0}', space=smem, size = 0x800, scoped, tag = 'prefetched SMEM operand 0']
  %s0 = inlined_call_operand.vmem [shape: s32[4,8], index: 0, kind: input, shape index: {}]
  %s1 = inlined_call_operand.hbm [shape: f32[16,32], index: 1, kind: input, shape index: {}]
  %s2 = inlined_call_operand.vmem [shape: bf16[32,512], index: 2, kind: input, shape index: {}]
  %s3 = inlined_call_operand.hbm [shape: bf16[128,512], index: 3, kind: input, shape index: {}]
  %s4 = inlined_call_operand.vmem [shape: f32[1,512], index: 4, kind: input, shape index: {}]
  %s5 = inlined_call_operand.vmem [shape: bf16[128,8], index: 5, kind: input, shape index: {}]
  %s6 = inlined_call_operand.vmem [shape: f32[1,8], index: 6, kind: input, shape index: {}]
  %s7 = inlined_call_operand.vmem [shape: f32[32,8], index: 7, kind: output, shape index: {}]
  %s8 = sld [smem:[#allocation0]]
  $region65: #{tpu_custom_call.1} parent=0
    _
  %s10 = ssub.s32 1, %s8
  %s11 = scalar_select 0, %s10, %s8
  %s12 = sshll.u32 %s0, 4
  %s13 = int_to_ptr.vmem [resolvable:$true] %s12
  %15 = dma.vmem_to_smem %s13, 64, [#allocation3], [#allocation2]
  %16 = dma.done [#allocation2], 64
  %17 = sfence
  $region1: #{tpu_custom_call.1} parent=0
    #allocation4 [shape = 'u8[8192]{0}', space=vmem, size = 0x2000, scoped, tag = 'input window, operand 1, single buffered']
    #allocation5 [shape = 's32[2]{0}', space=sflag, size = 0x8, scoped, tag = 'scoped memory for tpu_custom_call.1']
    #allocation6 [shape = 'u8[131072]{0}', space=vmem, size = 0x20000, scoped, tag = 'input window, operand 3, single buffered']
    #allocation7 [shape = 's32[1]{0}', space=sflag, size = 0x4, scoped, tag = 'scoped memory for tpu_custom_call.1']
    %18 = vsyncpa [#allocation5], 0
    %19 = vsyncpa [#allocation7], 0
    loop: start=0, step=1, limit=4
    $region2: #{tpu_custom_call.1} parent=1 // loop_pre_header
      _
    $region3: #{tpu_custom_call.1} parent=1 // loop_header
      %s21 = sphi 0, %s25
      %p22 = scmp.ge.s32.totalorder %s21, 4
      %s29 = sphi 0, %s29
      %s31 = sphi 0, %s29
      %s32 = sphi 0, %s31
      %s46 = sphi 0, %s32
      %s50 = sphi 0, %s50
      %s52 = sphi 0, %s50
      %s53 = sphi 0, %s52
      %s67 = sphi 0, %s53
      %s71 = sphi 0, %s71
      %s73 = sphi 0, %s71
      %s74 = sphi 0, %s73
      %s88 = sphi 0, %s74
      %s92 = sphi 0, %s92
      %s94 = sphi 0, %s92
      %s95 = sphi 0, %s94
      %s109 = sphi 0, %s95
      %s113 = sphi 0, %s113
      %s115 = sphi 0, %s113
      %s116 = sphi 0, %s115
      %s130 = sphi 0, %s116
      %s134 = sphi 0, %s134
      %s136 = sphi 0, %s134
      %s137 = sphi 0, %s136
      %s151 = sphi 0, %s137
      %s157 = sphi 0, %s159
      %s160 = sphi 0, %s157
      %s161 = sphi 0, %s160
      %s177 = sphi 0, %s161
    $region4: #{tpu_custom_call.1} parent=1 // loop_header_branch
      %24 = sbr.rel (%p22) target = $region8
    $region5: #{tpu_custom_call.1} parent=1 // loop_body
      %s26 = ssub.s32 %s21, 1
      %s27 = ssub.s32 %s21, 2
      %s28 = sadd.s32 %s21, 1
      %s30 = sadd.s32 %s29, 1
      %p33 = scmp.eq.s32.totalorder %s21, 1
      %p34 = scmp.ne.s32.totalorder %s29, %s31
      %p35 = scmp.eq.s32.totalorder %s21, 0
      %p36 = por %p34, %p35
      %p37 = scmp.ne.s32.totalorder %s29, %s31
      %p38 = scmp.eq.s32.totalorder %s26, 1
      %p39 = por %p37, %p38
      %p40 = scmp.ne.s32.totalorder %s31, %s32
      %p41 = scmp.eq.s32.totalorder %s26, 0
      %p42 = por %p40, %p41
      %p43 = scmp.ne.s32.totalorder %s31, %s32
      %p44 = scmp.eq.s32.totalorder %s27, 1
      %p45 = por %p43, %p44
      %p47 = scmp.ne.s32.totalorder %s32, %s46
      %p48 = scmp.eq.s32.totalorder %s27, 0
      %p49 = por %p47, %p48
      %s51 = sadd.s32 %s50, 1
      %p54 = scmp.eq.s32.totalorder %s21, 1
      %p55 = scmp.ne.s32.totalorder %s50, %s52
      %p56 = scmp.eq.s32.totalorder %s21, 0
      %p57 = por %p55, %p56
      %p58 = scmp.ne.s32.totalorder %s50, %s52
      %p59 = scmp.eq.s32.totalorder %s26, 1
      %p60 = por %p58, %p59
      %p61 = scmp.ne.s32.totalorder %s52, %s53
      %p62 = scmp.eq.s32.totalorder %s26, 0
      %p63 = por %p61, %p62
      %p64 = scmp.ne.s32.totalorder %s52, %s53
      %p65 = scmp.eq.s32.totalorder %s27, 1
      %p66 = por %p64, %p65
      %p68 = scmp.ne.s32.totalorder %s53, %s67
      %p69 = scmp.eq.s32.totalorder %s27, 0
      %p70 = por %p68, %p69
      %s72 = sadd.s32 %s71, 1
      %p75 = scmp.eq.s32.totalorder %s21, 1
      %p76 = scmp.ne.s32.totalorder %s71, %s73
      %p77 = scmp.eq.s32.totalorder %s21, 0
      %p78 = por %p76, %p77
      %p79 = scmp.ne.s32.totalorder %s71, %s73
      %p80 = scmp.eq.s32.totalorder %s26, 1
      %p81 = por %p79, %p80
      %p82 = scmp.ne.s32.totalorder %s73, %s74
      %p83 = scmp.eq.s32.totalorder %s26, 0
      %p84 = por %p82, %p83
      %p85 = scmp.ne.s32.totalorder %s73, %s74
      %p86 = scmp.eq.s32.totalorder %s27, 1
      %p87 = por %p85, %p86
      %p89 = scmp.ne.s32.totalorder %s74, %s88
      %p90 = scmp.eq.s32.totalorder %s27, 0
      %p91 = por %p89, %p90
      %s93 = sadd.s32 %s92, 1
      %p96 = scmp.eq.s32.totalorder %s21, 1
      %p97 = scmp.ne.s32.totalorder %s92, %s94
      %p98 = scmp.eq.s32.totalorder %s21, 0
      %p99 = por %p97, %p98
      %p100 = scmp.ne.s32.totalorder %s92, %s94
      %p101 = scmp.eq.s32.totalorder %s26, 1
      %p102 = por %p100, %p101
      %p103 = scmp.ne.s32.totalorder %s94, %s95
      %p104 = scmp.eq.s32.totalorder %s26, 0
      %p105 = por %p103, %p104
      %p106 = scmp.ne.s32.totalorder %s94, %s95
      %p107 = scmp.eq.s32.totalorder %s27, 1
      %p108 = por %p106, %p107
      %p110 = scmp.ne.s32.totalorder %s95, %s109
      %p111 = scmp.eq.s32.totalorder %s27, 0
      %p112 = por %p110, %p111
      %s114 = sadd.s32 %s113, 1
      %p117 = scmp.eq.s32.totalorder %s21, 1
      %p118 = scmp.ne.s32.totalorder %s113, %s115
      %p119 = scmp.eq.s32.totalorder %s21, 0
      %p120 = por %p118, %p119
      %p121 = scmp.ne.s32.totalorder %s113, %s115
      %p122 = scmp.eq.s32.totalorder %s26, 1
      %p123 = por %p121, %p122
      %p124 = scmp.ne.s32.totalorder %s115, %s116
      %p125 = scmp.eq.s32.totalorder %s26, 0
      %p126 = por %p124, %p125
      %p127 = scmp.ne.s32.totalorder %s115, %s116
      %p128 = scmp.eq.s32.totalorder %s27, 1
      %p129 = por %p127, %p128
      %p131 = scmp.ne.s32.totalorder %s116, %s130
      %p132 = scmp.eq.s32.totalorder %s27, 0
      %p133 = por %p131, %p132
      %s135 = sadd.s32 %s134, 1
      %p138 = scmp.eq.s32.totalorder %s21, 1
      %p139 = scmp.ne.s32.totalorder %s134, %s136
      %p140 = scmp.eq.s32.totalorder %s21, 0
      %p141 = por %p139, %p140
      %p142 = scmp.ne.s32.totalorder %s134, %s136
      %p143 = scmp.eq.s32.totalorder %s26, 1
      %p144 = por %p142, %p143
      %p145 = scmp.ne.s32.totalorder %s136, %s137
      %p146 = scmp.eq.s32.totalorder %s26, 0
      %p147 = por %p145, %p146
      %p148 = scmp.ne.s32.totalorder %s136, %s137
      %p149 = scmp.eq.s32.totalorder %s27, 1
      %p150 = por %p148, %p149
      %p152 = scmp.ne.s32.totalorder %s137, %s151
      %p153 = scmp.eq.s32.totalorder %s27, 0
      %p154 = por %p152, %p153
      %s155 = ssub.s32 %s21, %s28
      %p156 = scmp.eq.s32.totalorder %s155, 0
      %s158 = sadd.s32 %s157, 1
      %s159 = scalar_select %p156, %s157, %s158
      %p162 = pneg %p156
      %p163 = scmp.eq.s32.totalorder %s21, 1
      %p164 = por %p162, %p163
      %p165 = scmp.ne.s32.totalorder %s157, %s160
      %p166 = scmp.eq.s32.totalorder %s21, 0
      %p167 = por %p165, %p166
      %p168 = scmp.ne.s32.totalorder %s157, %s160
      %p169 = scmp.eq.s32.totalorder %s26, 1
      %p170 = por %p168, %p169
      %p171 = scmp.ne.s32.totalorder %s160, %s161
      %p172 = scmp.eq.s32.totalorder %s26, 0
      %p173 = por %p171, %p172
      %p174 = scmp.ne.s32.totalorder %s160, %s161
      %p175 = scmp.eq.s32.totalorder %s27, 1
      %p176 = por %p174, %p175
      %p178 = scmp.ne.s32.totalorder %s161, %s177
      %p179 = scmp.eq.s32.totalorder %s27, 0
      %p180 = por %p178, %p179
      %p181 = scmp.le.s32.totalorder 1, %s21
      %p182 = scmp.lt.s32.totalorder %s21, 3
      %p183 = pnand %p181, %p182
      %p184 = pneg %p183
      // Predicated region
      $region9: #{tpu_custom_call.1} parent=5 // pred_check
        _
      $region10: #{tpu_custom_call.1} parent=5 // pred_check_branch
        %186 = sbr.rel (%p183) target = $region12
      $region11: #{tpu_custom_call.1} parent=5 // pred_region
        %s187 = ssub.s32 %s21, 1
        // Predicated region
        $region13: #{tpu_custom_call.1} parent=11 // pred_check
          %p188 = pneg %p42
        $region14: #{tpu_custom_call.1} parent=11 // pred_check_branch
          %190 = sbr.rel (%p188) target = $region16
        $region15: #{tpu_custom_call.1} parent=11 // pred_region
          %s192 = ssub.s32 256, 256
          %193 = vsyncadd [#allocation5], %s192
          %s194 = sshll.u32 [#allocation4], 4
          %s195 = int_to_ptr.vmem [resolvable:$true] %s194
          %200 = dma.hbm_to_vmem [thread:$0]  %s1, 256, %s195, [#allocation5], 128, 128, 8
        $region16: #{tpu_custom_call.1} parent=11 // pred_fallthru
          _
        // Predicated region
        $region17: #{tpu_custom_call.1} parent=11 // pred_check
          %p201 = pneg %p63
        $region18: #{tpu_custom_call.1} parent=11 // pred_check_branch
          %203 = sbr.rel (%p201) target = $region20
        $region19: #{tpu_custom_call.1} parent=11 // pred_region
          _
        $region20: #{tpu_custom_call.1} parent=11 // pred_fallthru
          _
        // Predicated region
        $region21: #{tpu_custom_call.1} parent=11 // pred_check
          %p204 = pneg %p84
        $region22: #{tpu_custom_call.1} parent=11 // pred_check_branch
          %206 = sbr.rel (%p204) target = $region24
        $region23: #{tpu_custom_call.1} parent=11 // pred_region
          %s208 = ssub.s32 4096, 4096
          %209 = vsyncadd [#allocation7], %s208
          %s210 = sshll.u32 [#allocation6], 4
          %s211 = int_to_ptr.vmem [resolvable:$true] %s210
          %216 = dma.hbm_to_vmem [thread:$0]  %s3, 4096, %s211, [#allocation7], 256, 256, 16
        $region24: #{tpu_custom_call.1} parent=11 // pred_fallthru
          _
        // Predicated region
        $region25: #{tpu_custom_call.1} parent=11 // pred_check
          %p217 = pneg %p105
        $region26: #{tpu_custom_call.1} parent=11 // pred_check_branch
          %219 = sbr.rel (%p217) target = $region28
        $region27: #{tpu_custom_call.1} parent=11 // pred_region
          _
        $region28: #{tpu_custom_call.1} parent=11 // pred_fallthru
          _
        // Predicated region
        $region29: #{tpu_custom_call.1} parent=11 // pred_check
          %p220 = pneg %p126
        $region30: #{tpu_custom_call.1} parent=11 // pred_check_branch
          %222 = sbr.rel (%p220) target = $region32
        $region31: #{tpu_custom_call.1} parent=11 // pred_region
          _
        $region32: #{tpu_custom_call.1} parent=11 // pred_fallthru
          _
        // Predicated region
        $region33: #{tpu_custom_call.1} parent=11 // pred_check
          %p223 = pneg %p147
        $region34: #{tpu_custom_call.1} parent=11 // pred_check_branch
          %225 = sbr.rel (%p223) target = $region36
        $region35: #{tpu_custom_call.1} parent=11 // pred_region
          _
        $region36: #{tpu_custom_call.1} parent=11 // pred_fallthru
          _
      $region12: #{tpu_custom_call.1} parent=5 // pred_fallthru
        _
      %p226 = scmp.lt.s32.totalorder %s21, 2
      // Predicated region
      $region37: #{tpu_custom_call.1} parent=5 // pred_check
        %p227 = pneg %p226
      $region38: #{tpu_custom_call.1} parent=5 // pred_check_branch
        %229 = sbr.rel (%p227) target = $region40
      $region39: #{tpu_custom_call.1} parent=5 // pred_region
        _
      $region40: #{tpu_custom_call.1} parent=5 // pred_fallthru
        _
      %p230 = scmp.le.s32.totalorder 1, %s21
      %p231 = scmp.lt.s32.totalorder %s21, 3
      %p232 = pnand %p230, %p231
      %p233 = pneg %p232
      // Predicated region
      $region41: #{tpu_custom_call.1} parent=5 // pred_check
        _
      $region42: #{tpu_custom_call.1} parent=5 // pred_check_branch
        %235 = sbr.rel (%p232) target = $region44
      $region43: #{tpu_custom_call.1} parent=5 // pred_region
        %s236 = ssub.s32 %s21, 1
        // Predicated region
        $region45: #{tpu_custom_call.1} parent=43 // pred_check
          %p237 = pneg %p42
        $region46: #{tpu_custom_call.1} parent=43 // pred_check_branch
          %239 = sbr.rel (%p237) target = $region48
        $region47: #{tpu_custom_call.1} parent=43 // pred_region
          %240 = dma.done [#allocation5], 256
        $region48: #{tpu_custom_call.1} parent=43 // pred_fallthru
          _
        // Predicated region
        $region49: #{tpu_custom_call.1} parent=43 // pred_check
          %p241 = pneg %p84
        $region50: #{tpu_custom_call.1} parent=43 // pred_check_branch
          %243 = sbr.rel (%p241) target = $region52
        $region51: #{tpu_custom_call.1} parent=43 // pred_region
          %244 = dma.done [#allocation7], 4096
        $region52: #{tpu_custom_call.1} parent=43 // pred_fallthru
          _
        %p245 = pneg %p42
        %p246 = pneg %p39
        %p247 = pneg %p63
        %p248 = pneg %p60
        %p249 = pneg %p84
        %p250 = pneg %p81
        %p251 = pneg %p105
        %p252 = pneg %p102
        %p253 = pneg %p126
        %p254 = pneg %p123
        %p255 = pneg %p147
        %p256 = pneg %p144
        %p257 = pneg %p173
        %p258 = pneg %p170
        %s259 = smul.u32 2, %s26
        %p260 = scmp.lt.s32.totalorder %s259, 3
        %s261 = scalar_select %p260, %s259, 3
        %s262 = smul.addr %s261, 8
        %s263 = scalar_lea.vmem %s7, %s262
        %s264 = smul.u32 2, %s26
        %p265 = scmp.lt.s32.totalorder %s264, 3
        %s266 = scalar_select %p265, %s264, 3
        %s267 = smul.addr %s266, 8
        %s268 = scalar_lea.vmem %s7, %s267
        %s269 = smul.u32 2, %s26
        %s271 = smul.u32 %s26, 2
        %s272 = smul.u32 %s271, 128
        %s273 = sld [smem:[#allocation3 + %s272]]
        %p274 = scmp.gt.s32.totalorder %s273, 0
        %s275 = scalar_select %p274, %s273, 0
        %p276 = scmp.lt.s32.totalorder %s275, 15
        %s277 = scalar_select %p276, %s275, 15
        %s278 = scalar_lea.vmem [#allocation4], %s277
        %v279 = vld [vmem:[%s278] sm:$0x1]
        %s280 = sadd.s32 %s271, 1
        %s281 = smul.u32 %s280, 128
        %s282 = sld [smem:[#allocation3 + %s281]]
        %p283 = scmp.gt.s32.totalorder %s282, 0
        %s284 = scalar_select %p283, %s282, 0
        %p285 = scmp.lt.s32.totalorder %s284, 15
        %s286 = scalar_select %p285, %s284, 15
        %s287 = scalar_lea.vmem [#allocation4], %s286
        %v288 = vld [vmem:[%s287] sm:$0x1]
        %s289 = sadd.s32 %s272, 1
        %s290 = sld [smem:[#allocation3 + %s289]]
        %p291 = scmp.gt.s32.totalorder %s290, 0
        %s292 = scalar_select %p291, %s290, 0
        %p293 = scmp.lt.s32.totalorder %s292, 15
        %s294 = scalar_select %p293, %s292, 15
        %s295 = scalar_lea.vmem [#allocation4], %s294
        %v296 = vld [vmem:[%s295] sm:$0x1]
        %s297 = sadd.s32 %s281, 1
        %s298 = sld [smem:[#allocation3 + %s297]]
        %p299 = scmp.gt.s32.totalorder %s298, 0
        %s300 = scalar_select %p299, %s298, 0
        %p301 = scmp.lt.s32.totalorder %s300, 15
        %s302 = scalar_select %p301, %s300, 15
        %s303 = scalar_lea.vmem [#allocation4], %s302
        %v304 = vld [vmem:[%s303] sm:$0x1]
        %s305 = sadd.s32 %s272, 2
        %s306 = sld [smem:[#allocation3 + %s305]]
        %p307 = scmp.gt.s32.totalorder %s306, 0
        %s308 = scalar_select %p307, %s306, 0
        %p309 = scmp.lt.s32.totalorder %s308, 15
        %s310 = scalar_select %p309, %s308, 15
        %s311 = scalar_lea.vmem [#allocation4], %s310
        %v312 = vld [vmem:[%s311] sm:$0x1]
        %s313 = sadd.s32 %s281, 2
        %s314 = sld [smem:[#allocation3 + %s313]]
        %p315 = scmp.gt.s32.totalorder %s314, 0
        %s316 = scalar_select %p315, %s314, 0
        %p317 = scmp.lt.s32.totalorder %s316, 15
        %s318 = scalar_select %p317, %s316, 15
        %s319 = scalar_lea.vmem [#allocation4], %s318
        %v320 = vld [vmem:[%s319] sm:$0x1]
        %s321 = sadd.s32 %s272, 3
        %s322 = sld [smem:[#allocation3 + %s321]]
        %p323 = scmp.gt.s32.totalorder %s322, 0
        %s324 = scalar_select %p323, %s322, 0
        %p325 = scmp.lt.s32.totalorder %s324, 15
        %s326 = scalar_select %p325, %s324, 15
        %s327 = scalar_lea.vmem [#allocation4], %s326
        %v328 = vld [vmem:[%s327] sm:$0x1]
        %s329 = sadd.s32 %s281, 3
        %s330 = sld [smem:[#allocation3 + %s329]]
        %p331 = scmp.gt.s32.totalorder %s330, 0
        %s332 = scalar_select %p331, %s330, 0
        %p333 = scmp.lt.s32.totalorder %s332, 15
        %s334 = scalar_select %p333, %s332, 15
        %s335 = scalar_lea.vmem [#allocation4], %s334
        %v336 = vld [vmem:[%s335] sm:$0x1]
        %s337 = sadd.s32 %s272, 4
        %s338 = sld [smem:[#allocation3 + %s337]]
        %p339 = scmp.gt.s32.totalorder %s338, 0
        %s340 = scalar_select %p339, %s338, 0
        %p341 = scmp.lt.s32.totalorder %s340, 15
        %s342 = scalar_select %p341, %s340, 15
        %s343 = scalar_lea.vmem [#allocation4], %s342
        %v344 = vld [vmem:[%s343] sm:$0x1]
        %s345 = sadd.s32 %s281, 4
        %s346 = sld [smem:[#allocation3 + %s345]]
        %p347 = scmp.gt.s32.totalorder %s346, 0
        %s348 = scalar_select %p347, %s346, 0
        %p349 = scmp.lt.s32.totalorder %s348, 15
        %s350 = scalar_select %p349, %s348, 15
        %s351 = scalar_lea.vmem [#allocation4], %s350
        %v352 = vld [vmem:[%s351] sm:$0x1]
        %s353 = sadd.s32 %s272, 5
        %s354 = sld [smem:[#allocation3 + %s353]]
        %p355 = scmp.gt.s32.totalorder %s354, 0
        %s356 = scalar_select %p355, %s354, 0
        %p357 = scmp.lt.s32.totalorder %s356, 15
        %s358 = scalar_select %p357, %s356, 15
        %s359 = scalar_lea.vmem [#allocation4], %s358
        %v360 = vld [vmem:[%s359] sm:$0x1]
        %s361 = sadd.s32 %s281, 5
        %s362 = sld [smem:[#allocation3 + %s361]]
        %p363 = scmp.gt.s32.totalorder %s362, 0
        %s364 = scalar_select %p363, %s362, 0
        %p365 = scmp.lt.s32.totalorder %s364, 15
        %s366 = scalar_select %p365, %s364, 15
        %s367 = scalar_lea.vmem [#allocation4], %s366
        %v368 = vld [vmem:[%s367] sm:$0x1]
        %s369 = sadd.s32 %s272, 6
        %s370 = sld [smem:[#allocation3 + %s369]]
        %p371 = scmp.gt.s32.totalorder %s370, 0
        %s372 = scalar_select %p371, %s370, 0
        %p373 = scmp.lt.s32.totalorder %s372, 15
        %s374 = scalar_select %p373, %s372, 15
        %s375 = scalar_lea.vmem [#allocation4], %s374
        %v376 = vld [vmem:[%s375] sm:$0x1]
        %s377 = sadd.s32 %s281, 6
        %s378 = sld [smem:[#allocation3 + %s377]]
        %p379 = scmp.gt.s32.totalorder %s378, 0
        %s380 = scalar_select %p379, %s378, 0
        %p381 = scmp.lt.s32.totalorder %s380, 15
        %s382 = scalar_select %p381, %s380, 15
        %s383 = scalar_lea.vmem [#allocation4], %s382
        %v384 = vld [vmem:[%s383] sm:$0x1]
        %s385 = sadd.s32 %s272, 7
        %s386 = sld [smem:[#allocation3 + %s385]]
        %p387 = scmp.gt.s32.totalorder %s386, 0
        %s388 = scalar_select %p387, %s386, 0
        %p389 = scmp.lt.s32.totalorder %s388, 15
        %s390 = scalar_select %p389, %s388, 15
        %s391 = scalar_lea.vmem [#allocation4], %s390
        %v392 = vld [vmem:[%s391] sm:$0x1]
        %s393 = sadd.s32 %s281, 7
        %s394 = sld [smem:[#allocation3 + %s393]]
        %p395 = scmp.gt.s32.totalorder %s394, 0
        %s396 = scalar_select %p395, %s394, 0
        %p397 = scmp.lt.s32.totalorder %s396, 15
        %s398 = scalar_select %p397, %s396, 15
        %s399 = scalar_lea.vmem [#allocation4], %s398
        %v400 = vld [vmem:[%s399] sm:$0x1]
        %v402 = vrot.slane %v288, 7
        %v405 = vrot.slane %v296, 6
        %v408 = vrot.slane %v304, 5
        %v411 = vrot.slane %v312, 4
        %v414 = vrot.slane %v320, 3
        %v417 = vrot.slane %v328, 2
        %v420 = vrot.slane %v336, 1
        %v423 = vrot.slane %v352, 7
        %v426 = vrot.slane %v360, 6
        %v429 = vrot.slane %v368, 5
        %v432 = vrot.slane %v376, 4
        %v435 = vrot.slane %v384, 3
        %v438 = vrot.slane %v392, 2
        %v441 = vrot.slane %v400, 1
        %vm443 = vcmask 1040384
        %v444 = vsel %vm443, %v279, %v402
        %vm445 = vcmask 1041408
        %v446 = vsel %vm445, %v444, %v405
        %vm447 = vcmask 1042432
        %v448 = vsel %vm447, %v446, %v408
        %vm449 = vcmask 1043456
        %v450 = vsel %vm449, %v448, %v411
        %vm451 = vcmask 1044480
        %v452 = vsel %vm451, %v450, %v414
        %vm453 = vcmask 1045504
        %v454 = vsel %vm453, %v452, %v417
        %vm455 = vcmask 1046528
        %v456 = vsel %vm455, %v454, %v420
        %v457 = vsel %vm443, %v344, %v423
        %v458 = vsel %vm445, %v457, %v426
        %v459 = vsel %vm447, %v458, %v429
        %v460 = vsel %vm449, %v459, %v432
        %v461 = vsel %vm451, %v460, %v435
        %v462 = vsel %vm453, %v461, %v438
        %v463 = vsel %vm455, %v462, %v441
        %v464 = vpack.c.bf16 %v463, %v456
        %v465 = vld [vmem:[%s2] sm:$0xff]
        %v466 = vld [vmem:[%s2 + $0x8] sm:$0xff]
        %v467 = vld [vmem:[%s2 + $0x10] sm:$0xff]
        %v468 = vld [vmem:[%s2 + $0x18] sm:$0xff]
        %v469 = vld [vmem:[%s2 + $0x20] sm:$0xff]
        %v470 = vld [vmem:[%s2 + $0x28] sm:$0xff]
        %v471 = vld [vmem:[%s2 + $0x30] sm:$0xff]
        %v472 = vld [vmem:[%s2 + $0x38] sm:$0xff]
        %v473 = vld [vmem:[%s4] sm:$0xf]
        %v475 = vlaneseq
        %v476 = vshrl.u32 %v475, 7
        %v477 = vsub.s32 0, %v476
        %v478 = vrot.slane %v473, %v477
        %v479 = vlaneseq
        %v480 = vshrl.u32 %v479, 7
        %v481 = vsub.s32 1, %v480
        %v482 = vrot.slane %v473, %v481
        %v483 = vlaneseq
        %v484 = vshrl.u32 %v483, 7
        %v485 = vsub.s32 2, %v484
        %v486 = vrot.slane %v473, %v485
        %v487 = vlaneseq
        %v488 = vshrl.u32 %v487, 7
        %v489 = vsub.s32 3, %v488
        %v490 = vrot.slane %v473, %v489
        %v503 = vunpack.c.l.b16 %v465
        %v504 = vunpack.c.h.b16 %v465
        %v505 = vunpack.c.l.b16 %v466
        %v506 = vunpack.c.h.b16 %v466
        %v507 = vunpack.c.l.b16 %v467
        %v508 = vunpack.c.h.b16 %v467
        %v509 = vunpack.c.l.b16 %v468
        %v510 = vunpack.c.h.b16 %v468
        %v511 = vunpack.c.l.b16 %v469
        %v512 = vunpack.c.h.b16 %v469
        %v513 = vunpack.c.l.b16 %v470
        %v514 = vunpack.c.h.b16 %v470
        %v515 = vunpack.c.l.b16 %v471
        %v516 = vunpack.c.h.b16 %v471
        %v517 = vunpack.c.l.b16 %v472
        %v518 = vunpack.c.h.b16 %v472
        %v519 = vpack.c.b16 %v507, %v503
        %v520 = vpack.c.b16 %v508, %v504
        %v521 = vpack.c.b16 %v509, %v505
        %v522 = vpack.c.b16 %v510, %v506
        %v523 = vpack.c.b16 %v515, %v511
        %v524 = vpack.c.b16 %v516, %v512
        %v525 = vpack.c.b16 %v517, %v513
        %v526 = vpack.c.b16 %v518, %v514
        %vm535 = vcmask 261120
        %v537 = vsel %vm535, %v464, 0
        %539 = vmatprep.subr.bf16.mxu0 0
        %540 = vmatpush1.bf16.msra.mxu0 0
        %541 = vmatprep.subr.bf16.mxu0 0
        %542 = vmatpush1.bf16.msra.mxu0 0
        %543 = vmatprep.subr.bf16.mxu0 0
        %544 = vmatpush1.bf16.msra.mxu0 0
        %545 = vmatprep.subr.bf16.mxu0 0
        %546 = vmatpush1.bf16.msra.mxu0 0
        %547 = vmatprep.subr.bf16.mxu0 0
        %548 = vmatpush1.bf16.msra.mxu0 0
        %549 = vmatprep.subr.bf16.mxu0 0
        %550 = vmatpush1.bf16.msra.mxu0 0
        %551 = vmatprep.subr.bf16.mxu0 %v524
        %552 = vmatpush1.bf16.msra.mxu0 %v523
        %553 = vmatprep.subr.bf16.mxu0 %v520
        %554 = vmatpush1.bf16.msra.mxu0 %v519
        %555 = vmatprep.subr.bf16.mxu0 0
        %556 = vmatpush2.bf16.msra.mxu0 0
        %557 = vmatprep.subr.bf16.mxu0 0
        %558 = vmatpush2.bf16.msra.mxu0 0
        %559 = vmatprep.subr.bf16.mxu0 0
        %560 = vmatpush2.bf16.msra.mxu0 0
        %561 = vmatprep.subr.bf16.mxu0 0
        %562 = vmatpush2.bf16.msra.mxu0 0
        %563 = vmatprep.subr.bf16.mxu0 0
        %564 = vmatpush2.bf16.msra.mxu0 0
        %565 = vmatprep.subr.bf16.mxu0 0
        %566 = vmatpush2.bf16.msra.mxu0 0
        %567 = vmatprep.subr.bf16.mxu0 0
        %568 = vmatpush2.bf16.msra.mxu0 0
        %569 = vmatprep.subr.bf16.mxu0 0
        %570 = vmatpush2.bf16.msra.mxu0 0
        %571 = vmatprep.mubr.bf16.mxu0 0
        %572 = vmatmul.mubr.bf16.gmra.mxu0 %v537
        %v573 = vpop.f32.mrf.mxu0
        %v574 = vadd.f32 %v478, %v573
        %v575 = vpop.f32.mrf.mxu0
        %v576 = vadd.f32 %v482, %v575
        %v577 = vpop.f32.mrf.mxu0
        %v578 = vadd.f32 %v478, %v577
        %v579 = vpop.f32.mrf.mxu0
        %v580 = vadd.f32 %v482, %v579
        %581 = vdwg.mxu0
        %582 = vmatprep.subr.bf16.mxu0 0
        %583 = vmatpush1.bf16.msra.mxu0 0
        %584 = vmatprep.subr.bf16.mxu0 0
        %585 = vmatpush1.bf16.msra.mxu0 0
        %586 = vmatprep.subr.bf16.mxu0 0
        %587 = vmatpush1.bf16.msra.mxu0 0
        %588 = vmatprep.subr.bf16.mxu0 0
        %589 = vmatpush1.bf16.msra.mxu0 0
        %590 = vmatprep.subr.bf16.mxu0 0
        %591 = vmatpush1.bf16.msra.mxu0 0
        %592 = vmatprep.subr.bf16.mxu0 0
        %593 = vmatpush1.bf16.msra.mxu0 0
        %594 = vmatprep.subr.bf16.mxu0 %v526
        %595 = vmatpush1.bf16.msra.mxu0 %v525
        %596 = vmatprep.subr.bf16.mxu0 %v522
        %597 = vmatpush1.bf16.msra.mxu0 %v521
        %598 = vmatprep.subr.bf16.mxu0 0
        %599 = vmatpush2.bf16.msra.mxu0 0
        %600 = vmatprep.subr.bf16.mxu0 0
        %601 = vmatpush2.bf16.msra.mxu0 0
        %602 = vmatprep.subr.bf16.mxu0 0
        %603 = vmatpush2.bf16.msra.mxu0 0
        %604 = vmatprep.subr.bf16.mxu0 0
        %605 = vmatpush2.bf16.msra.mxu0 0
        %606 = vmatprep.subr.bf16.mxu0 0
        %607 = vmatpush2.bf16.msra.mxu0 0
        %608 = vmatprep.subr.bf16.mxu0 0
        %609 = vmatpush2.bf16.msra.mxu0 0
        %610 = vmatprep.subr.bf16.mxu0 0
        %611 = vmatpush2.bf16.msra.mxu0 0
        %612 = vmatprep.subr.bf16.mxu0 0
        %613 = vmatpush2.bf16.msra.mxu0 0
        %614 = vmatprep.mubr.bf16.mxu0 0
        %615 = vmatmul.mubr.bf16.gmra.mxu0 %v537
        %v616 = vpop.f32.mrf.mxu0
        %v617 = vadd.f32 %v486, %v616
        %v618 = vpop.f32.mrf.mxu0
        %v619 = vadd.f32 %v490, %v618
        %v620 = vpop.f32.mrf.mxu0
        %v621 = vadd.f32 %v486, %v620
        %v622 = vpop.f32.mrf.mxu0
        %v623 = vadd.f32 %v490, %v622
        %624 = vdwg.mxu0
        %v625 = vld [vmem:[#allocation6] sm:$0xff]
        %v626 = vld [vmem:[#allocation6 + $0x8] sm:$0xff]
        %v627 = vld [vmem:[#allocation6 + $0x10] sm:$0xff]
        %v628 = vld [vmem:[#allocation6 + $0x18] sm:$0xff]
        %v629 = vld [vmem:[#allocation6 + $0x20] sm:$0xff]
        %v630 = vld [vmem:[#allocation6 + $0x28] sm:$0xff]
        %v631 = vld [vmem:[#allocation6 + $0x30] sm:$0xff]
        %v632 = vld [vmem:[#allocation6 + $0x38] sm:$0xff]
        %v633 = vld [vmem:[#allocation6 + $0x40] sm:$0xff]
        %v634 = vld [vmem:[#allocation6 + $0x48] sm:$0xff]
        %v635 = vld [vmem:[#allocation6 + $0x50] sm:$0xff]
        %v636 = vld [vmem:[#allocation6 + $0x58] sm:$0xff]
        %v637 = vld [vmem:[#allocation6 + $0x60] sm:$0xff]
        %v638 = vld [vmem:[#allocation6 + $0x68] sm:$0xff]
        %v639 = vld [vmem:[#allocation6 + $0x70] sm:$0xff]
        %v640 = vld [vmem:[#allocation6 + $0x78] sm:$0xff]
        %v641 = vld [vmem:[#allocation6 + $0x80] sm:$0xff]
        %v642 = vld [vmem:[#allocation6 + $0x88] sm:$0xff]
        %v643 = vld [vmem:[#allocation6 + $0x90] sm:$0xff]
        %v644 = vld [vmem:[#allocation6 + $0x98] sm:$0xff]
        %v645 = vld [vmem:[#allocation6 + $0xa0] sm:$0xff]
        %v646 = vld [vmem:[#allocation6 + $0xa8] sm:$0xff]
        %v647 = vld [vmem:[#allocation6 + $0xb0] sm:$0xff]
        %v648 = vld [vmem:[#allocation6 + $0xb8] sm:$0xff]
        %v649 = vld [vmem:[#allocation6 + $0xc0] sm:$0xff]
        %v650 = vld [vmem:[#allocation6 + $0xc8] sm:$0xff]
        %v651 = vld [vmem:[#allocation6 + $0xd0] sm:$0xff]
        %v652 = vld [vmem:[#allocation6 + $0xd8] sm:$0xff]
        %v653 = vld [vmem:[#allocation6 + $0xe0] sm:$0xff]
        %v654 = vld [vmem:[#allocation6 + $0xe8] sm:$0xff]
        %v655 = vld [vmem:[#allocation6 + $0xf0] sm:$0xff]
        %v656 = vld [vmem:[#allocation6 + $0xf8] sm:$0xff]
        %v689 = vunpack.c.l.b16 %v625
        %v690 = vunpack.c.h.b16 %v625
        %v691 = vunpack.c.l.b16 %v626
        %v692 = vunpack.c.h.b16 %v626
        %v693 = vunpack.c.l.b16 %v627
        %v694 = vunpack.c.h.b16 %v627
        %v695 = vunpack.c.l.b16 %v628
        %v696 = vunpack.c.h.b16 %v628
        %v697 = vunpack.c.l.b16 %v629
        %v698 = vunpack.c.h.b16 %v629
        %v699 = vunpack.c.l.b16 %v630
        %v700 = vunpack.c.h.b16 %v630
        %v701 = vunpack.c.l.b16 %v631
        %v702 = vunpack.c.h.b16 %v631
        %v703 = vunpack.c.l.b16 %v632
        %v704 = vunpack.c.h.b16 %v632
        %v705 = vunpack.c.l.b16 %v633
        %v706 = vunpack.c.h.b16 %v633
        %v707 = vunpack.c.l.b16 %v634
        %v708 = vunpack.c.h.b16 %v634
        %v709 = vunpack.c.l.b16 %v635
        %v710 = vunpack.c.h.b16 %v635
        %v711 = vunpack.c.l.b16 %v636
        %v712 = vunpack.c.h.b16 %v636
        %v713 = vunpack.c.l.b16 %v637
        %v714 = vunpack.c.h.b16 %v637
        %v715 = vunpack.c.l.b16 %v638
        %v716 = vunpack.c.h.b16 %v638
        %v717 = vunpack.c.l.b16 %v639
        %v718 = vunpack.c.h.b16 %v639
        %v719 = vunpack.c.l.b16 %v640
        %v720 = vunpack.c.h.b16 %v640
        %v721 = vunpack.c.l.b16 %v641
        %v722 = vunpack.c.h.b16 %v641
        %v723 = vunpack.c.l.b16 %v642
        %v724 = vunpack.c.h.b16 %v642
        %v725 = vunpack.c.l.b16 %v643
        %v726 = vunpack.c.h.b16 %v643
        %v727 = vunpack.c.l.b16 %v644
        %v728 = vunpack.c.h.b16 %v644
        %v729 = vunpack.c.l.b16 %v645
        %v730 = vunpack.c.h.b16 %v645
        %v731 = vunpack.c.l.b16 %v646
        %v732 = vunpack.c.h.b16 %v646
        %v733 = vunpack.c.l.b16 %v647
        %v734 = vunpack.c.h.b16 %v647
        %v735 = vunpack.c.l.b16 %v648
        %v736 = vunpack.c.h.b16 %v648
        %v737 = vunpack.c.l.b16 %v649
        %v738 = vunpack.c.h.b16 %v649
        %v739 = vunpack.c.l.b16 %v650
        %v740 = vunpack.c.h.b16 %v650
        %v741 = vunpack.c.l.b16 %v651
        %v742 = vunpack.c.h.b16 %v651
        %v743 = vunpack.c.l.b16 %v652
        %v744 = vunpack.c.h.b16 %v652
        %v745 = vunpack.c.l.b16 %v653
        %v746 = vunpack.c.h.b16 %v653
        %v747 = vunpack.c.l.b16 %v654
        %v748 = vunpack.c.h.b16 %v654
        %v749 = vunpack.c.l.b16 %v655
        %v750 = vunpack.c.h.b16 %v655
        %v751 = vunpack.c.l.b16 %v656
        %v752 = vunpack.c.h.b16 %v656
        %v753 = vpack.c.b16 %v693, %v689
        %v754 = vpack.c.b16 %v694, %v690
        %v755 = vpack.c.b16 %v695, %v691
        %v756 = vpack.c.b16 %v696, %v692
        %v757 = vpack.c.b16 %v701, %v697
        %v758 = vpack.c.b16 %v702, %v698
        %v759 = vpack.c.b16 %v703, %v699
        %v760 = vpack.c.b16 %v704, %v700
        %v761 = vpack.c.b16 %v709, %v705
        %v762 = vpack.c.b16 %v710, %v706
        %v763 = vpack.c.b16 %v711, %v707
        %v764 = vpack.c.b16 %v712, %v708
        %v765 = vpack.c.b16 %v717, %v713
        %v766 = vpack.c.b16 %v718, %v714
        %v767 = vpack.c.b16 %v719, %v715
        %v768 = vpack.c.b16 %v720, %v716
        %v769 = vpack.c.b16 %v725, %v721
        %v770 = vpack.c.b16 %v726, %v722
        %v771 = vpack.c.b16 %v727, %v723
        %v772 = vpack.c.b16 %v728, %v724
        %v773 = vpack.c.b16 %v733, %v729
        %v774 = vpack.c.b16 %v734, %v730
        %v775 = vpack.c.b16 %v735, %v731
        %v776 = vpack.c.b16 %v736, %v732
        %v777 = vpack.c.b16 %v741, %v737
        %v778 = vpack.c.b16 %v742, %v738
        %v779 = vpack.c.b16 %v743, %v739
        %v780 = vpack.c.b16 %v744, %v740
        %v781 = vpack.c.b16 %v749, %v745
        %v782 = vpack.c.b16 %v750, %v746
        %v783 = vpack.c.b16 %v751, %v747
        %v784 = vpack.c.b16 %v752, %v748
        %817 = vmatprep.subr.bf16.mxu0 %v782
        %818 = vmatpush1.bf16.msra.mxu0 %v781
        %819 = vmatprep.subr.bf16.mxu0 %v778
        %820 = vmatpush1.bf16.msra.mxu0 %v777
        %821 = vmatprep.subr.bf16.mxu0 %v774
        %822 = vmatpush1.bf16.msra.mxu0 %v773
        %823 = vmatprep.subr.bf16.mxu0 %v770
        %824 = vmatpush1.bf16.msra.mxu0 %v769
        %825 = vmatprep.subr.bf16.mxu0 %v766
        %826 = vmatpush1.bf16.msra.mxu0 %v765
        %827 = vmatprep.subr.bf16.mxu0 %v762
        %828 = vmatpush1.bf16.msra.mxu0 %v761
        %829 = vmatprep.subr.bf16.mxu0 %v758
        %830 = vmatpush1.bf16.msra.mxu0 %v757
        %831 = vmatprep.subr.bf16.mxu0 %v754
        %832 = vmatpush1.bf16.msra.mxu0 %v753
        %833 = vmatprep.subr.bf16.mxu0 0
        %834 = vmatpush2.bf16.msra.mxu0 0
        %835 = vmatprep.subr.bf16.mxu0 0
        %836 = vmatpush2.bf16.msra.mxu0 0
        %837 = vmatprep.subr.bf16.mxu0 0
        %838 = vmatpush2.bf16.msra.mxu0 0
        %839 = vmatprep.subr.bf16.mxu0 0
        %840 = vmatpush2.bf16.msra.mxu0 0
        %841 = vmatprep.subr.bf16.mxu0 0
        %842 = vmatpush2.bf16.msra.mxu0 0
        %843 = vmatprep.subr.bf16.mxu0 0
        %844 = vmatpush2.bf16.msra.mxu0 0
        %845 = vmatprep.subr.bf16.mxu0 0
        %846 = vmatpush2.bf16.msra.mxu0 0
        %847 = vmatprep.subr.bf16.mxu0 0
        %848 = vmatpush2.bf16.msra.mxu0 0
        %849 = vmatprep.mubr.bf16.mxu0 0
        %850 = vmatmul.mubr.bf16.gmra.mxu0 0
        %v851 = vpop.f32.mrf.mxu0
        %v852 = vadd.f32 %v574, %v851
        %v853 = vpop.f32.mrf.mxu0
        %v854 = vadd.f32 %v576, %v853
        %v855 = vpop.f32.mrf.mxu0
        %v856 = vpop.f32.mrf.mxu0
        %857 = vdwg.mxu0
        %858 = vmatprep.subr.bf16.mxu0 %v784
        %859 = vmatpush1.bf16.msra.mxu0 %v783
        %860 = vmatprep.subr.bf16.mxu0 %v780
        %861 = vmatpush1.bf16.msra.mxu0 %v779
        %862 = vmatprep.subr.bf16.mxu0 %v776
        %863 = vmatpush1.bf16.msra.mxu0 %v775
        %864 = vmatprep.subr.bf16.mxu0 %v772
        %865 = vmatpush1.bf16.msra.mxu0 %v771
        %866 = vmatprep.subr.bf16.mxu0 %v768
        %867 = vmatpush1.bf16.msra.mxu0 %v767
        %868 = vmatprep.subr.bf16.mxu0 %v764
        %869 = vmatpush1.bf16.msra.mxu0 %v763
        %870 = vmatprep.subr.bf16.mxu0 %v760
        %871 = vmatpush1.bf16.msra.mxu0 %v759
        %872 = vmatprep.subr.bf16.mxu0 %v756
        %873 = vmatpush1.bf16.msra.mxu0 %v755
        %874 = vmatprep.subr.bf16.mxu0 0
        %875 = vmatpush2.bf16.msra.mxu0 0
        %876 = vmatprep.subr.bf16.mxu0 0
        %877 = vmatpush2.bf16.msra.mxu0 0
        %878 = vmatprep.subr.bf16.mxu0 0
        %879 = vmatpush2.bf16.msra.mxu0 0
        %880 = vmatprep.subr.bf16.mxu0 0
        %881 = vmatpush2.bf16.msra.mxu0 0
        %882 = vmatprep.subr.bf16.mxu0 0
        %883 = vmatpush2.bf16.msra.mxu0 0
        %884 = vmatprep.subr.bf16.mxu0 0
        %885 = vmatpush2.bf16.msra.mxu0 0
        %886 = vmatprep.subr.bf16.mxu0 0
        %887 = vmatpush2.bf16.msra.mxu0 0
        %888 = vmatprep.subr.bf16.mxu0 0
        %889 = vmatpush2.bf16.msra.mxu0 0
        %890 = vmatprep.mubr.bf16.mxu0 0
        %891 = vmatmul.mubr.bf16.gmra.mxu0 0
        %v892 = vpop.f32.mrf.mxu0
        %v893 = vadd.f32 %v617, %v892
        %v894 = vpop.f32.mrf.mxu0
        %v895 = vadd.f32 %v619, %v894
        %v896 = vpop.f32.mrf.mxu0
        %v897 = vpop.f32.mrf.mxu0
        %898 = vdwg.mxu0
        %v899 = vxor.u32 %v852, 2147483648
        %v900 = vmul.f32 %v899, 1.442695
        %v901 = vpow.pop %v900
        %v902 = vadd.f32 %v901, 1.0
        %v903 = vrcp.pop %v902
        %v904 = vmul.f32 1.0, %v903
        %v905 = vxor.u32 %v854, 2147483648
        %v906 = vmul.f32 %v905, 1.442695
        %v907 = vpow.pop %v906
        %v908 = vadd.f32 %v907, 1.0
        %v909 = vrcp.pop %v908
        %v910 = vmul.f32 1.0, %v909
        %v911 = vtanh.pop %v893
        %v912 = vxor.u32 %v895, 2147483648
        %v913 = vmul.f32 %v912, 1.442695
        %v914 = vpow.pop %v913
        %v915 = vadd.f32 %v914, 1.0
        %v916 = vrcp.pop %v915
        %v917 = vmul.f32 1.0, %v916
        %v918 = vmul.f32 %v910, 0.0
        %v919 = vmul.f32 %v904, %v911
        %v920 = vadd.f32 %v918, %v919
        %v921 = vtanh.pop %v920
        %v922 = vmul.f32 %v917, %v921
        %v923 = vpack.c.bf16 %v922, %v922
        %v928 = vrot.slane %v574, 2
        %v929 = vrot.slane %v576, 2
        %v930 = vrot.slane %v617, 2
        %v931 = vrot.slane %v619, 2
        %936 = vmatprep.subr.bf16.mxu0 %v782
        %937 = vmatpush1.bf16.msra.mxu0 %v781
        %938 = vmatprep.subr.bf16.mxu0 %v778
        %939 = vmatpush1.bf16.msra.mxu0 %v777
        %940 = vmatprep.subr.bf16.mxu0 %v774
        %941 = vmatpush1.bf16.msra.mxu0 %v773
        %942 = vmatprep.subr.bf16.mxu0 %v770
        %943 = vmatpush1.bf16.msra.mxu0 %v769
        %944 = vmatprep.subr.bf16.mxu0 %v766
        %945 = vmatpush1.bf16.msra.mxu0 %v765
        %946 = vmatprep.subr.bf16.mxu0 %v762
        %947 = vmatpush1.bf16.msra.mxu0 %v761
        %948 = vmatprep.subr.bf16.mxu0 %v758
        %949 = vmatpush1.bf16.msra.mxu0 %v757
        %950 = vmatprep.subr.bf16.mxu0 %v754
        %951 = vmatpush1.bf16.msra.mxu0 %v753
        %952 = vmatprep.subr.bf16.mxu0 0
        %953 = vmatpush2.bf16.msra.mxu0 0
        %954 = vmatprep.subr.bf16.mxu0 0
        %955 = vmatpush2.bf16.msra.mxu0 0
        %956 = vmatprep.subr.bf16.mxu0 0
        %957 = vmatpush2.bf16.msra.mxu0 0
        %958 = vmatprep.subr.bf16.mxu0 0
        %959 = vmatpush2.bf16.msra.mxu0 0
        %960 = vmatprep.subr.bf16.mxu0 0
        %961 = vmatpush2.bf16.msra.mxu0 0
        %962 = vmatprep.subr.bf16.mxu0 0
        %963 = vmatpush2.bf16.msra.mxu0 0
        %964 = vmatprep.subr.bf16.mxu0 0
        %965 = vmatpush2.bf16.msra.mxu0 0
        %966 = vmatprep.subr.bf16.mxu0 0
        %967 = vmatpush2.bf16.msra.mxu0 0
        %968 = vmatprep.mubr.bf16.mxu0 0
        %969 = vmatmul.mubr.bf16.gmra.mxu0 %v923
        %v970 = vpop.f32.mrf.mxu0
        %v971 = vadd.f32 %v928, %v970
        %v972 = vpop.f32.mrf.mxu0
        %v973 = vadd.f32 %v929, %v972
        %v974 = vpop.f32.mrf.mxu0
        %v975 = vpop.f32.mrf.mxu0
        %976 = vdwg.mxu0
        %977 = vmatprep.subr.bf16.mxu0 %v784
        %978 = vmatpush1.bf16.msra.mxu0 %v783
        %979 = vmatprep.subr.bf16.mxu0 %v780
        %980 = vmatpush1.bf16.msra.mxu0 %v779
        %981 = vmatprep.subr.bf16.mxu0 %v776
        %982 = vmatpush1.bf16.msra.mxu0 %v775
        %983 = vmatprep.subr.bf16.mxu0 %v772
        %984 = vmatpush1.bf16.msra.mxu0 %v771
        %985 = vmatprep.subr.bf16.mxu0 %v768
        %986 = vmatpush1.bf16.msra.mxu0 %v767
        %987 = vmatprep.subr.bf16.mxu0 %v764
        %988 = vmatpush1.bf16.msra.mxu0 %v763
        %989 = vmatprep.subr.bf16.mxu0 %v760
        %990 = vmatpush1.bf16.msra.mxu0 %v759
        %991 = vmatprep.subr.bf16.mxu0 %v756
        %992 = vmatpush1.bf16.msra.mxu0 %v755
        %993 = vmatprep.subr.bf16.mxu0 0
        %994 = vmatpush2.bf16.msra.mxu0 0
        %995 = vmatprep.subr.bf16.mxu0 0
        %996 = vmatpush2.bf16.msra.mxu0 0
        %997 = vmatprep.subr.bf16.mxu0 0
        %998 = vmatpush2.bf16.msra.mxu0 0
        %999 = vmatprep.subr.bf16.mxu0 0
        %1000 = vmatpush2.bf16.msra.mxu0 0
        %1001 = vmatprep.subr.bf16.mxu0 0
        %1002 = vmatpush2.bf16.msra.mxu0 0
        %1003 = vmatprep.subr.bf16.mxu0 0
        %1004 = vmatpush2.bf16.msra.mxu0 0
        %1005 = vmatprep.subr.bf16.mxu0 0
        %1006 = vmatpush2.bf16.msra.mxu0 0
        %1007 = vmatprep.subr.bf16.mxu0 0
        %1008 = vmatpush2.bf16.msra.mxu0 0
        %1009 = vmatprep.mubr.bf16.mxu0 0
        %1010 = vmatmul.mubr.bf16.gmra.mxu0 %v923
        %v1011 = vpop.f32.mrf.mxu0
        %v1012 = vadd.f32 %v930, %v1011
        %v1013 = vpop.f32.mrf.mxu0
        %v1014 = vadd.f32 %v931, %v1013
        %v1015 = vpop.f32.mrf.mxu0
        %v1016 = vpop.f32.mrf.mxu0
        %1017 = vdwg.mxu0
        %v1018 = vxor.u32 %v971, 2147483648
        %v1019 = vmul.f32 %v1018, 1.442695
        %v1020 = vpow.pop %v1019
        %v1021 = vadd.f32 %v1020, 1.0
        %v1022 = vrcp.pop %v1021
        %v1023 = vmul.f32 1.0, %v1022
        %v1024 = vxor.u32 %v973, 2147483648
        %v1025 = vmul.f32 %v1024, 1.442695
        %v1026 = vpow.pop %v1025
        %v1027 = vadd.f32 %v1026, 1.0
        %v1028 = vrcp.pop %v1027
        %v1029 = vmul.f32 1.0, %v1028
        %v1030 = vtanh.pop %v1012
        %v1031 = vxor.u32 %v1014, 2147483648
        %v1032 = vmul.f32 %v1031, 1.442695
        %v1033 = vpow.pop %v1032
        %v1034 = vadd.f32 %v1033, 1.0
        %v1035 = vrcp.pop %v1034
        %v1036 = vmul.f32 1.0, %v1035
        %v1037 = vmul.f32 %v1029, %v920
        %v1038 = vmul.f32 %v1023, %v1030
        %v1039 = vadd.f32 %v1037, %v1038
        %v1040 = vtanh.pop %v1039
        %v1041 = vmul.f32 %v1036, %v1040
        %v1042 = vpack.c.bf16 %v1041, %v1041
        %v1043 = vrot.slane %v574, 4
        %v1044 = vrot.slane %v576, 4
        %v1045 = vrot.slane %v617, 4
        %v1046 = vrot.slane %v619, 4
        %1051 = vmatprep.subr.bf16.mxu0 %v782
        %1052 = vmatpush1.bf16.msra.mxu0 %v781
        %1053 = vmatprep.subr.bf16.mxu0 %v778
        %1054 = vmatpush1.bf16.msra.mxu0 %v777
        %1055 = vmatprep.subr.bf16.mxu0 %v774
        %1056 = vmatpush1.bf16.msra.mxu0 %v773
        %1057 = vmatprep.subr.bf16.mxu0 %v770
        %1058 = vmatpush1.bf16.msra.mxu0 %v769
        %1059 = vmatprep.subr.bf16.mxu0 %v766
        %1060 = vmatpush1.bf16.msra.mxu0 %v765
        %1061 = vmatprep.subr.bf16.mxu0 %v762
        %1062 = vmatpush1.bf16.msra.mxu0 %v761
        %1063 = vmatprep.subr.bf16.mxu0 %v758
        %1064 = vmatpush1.bf16.msra.mxu0 %v757
        %1065 = vmatprep.subr.bf16.mxu0 %v754
        %1066 = vmatpush1.bf16.msra.mxu0 %v753
        %1067 = vmatprep.subr.bf16.mxu0 0
        %1068 = vmatpush2.bf16.msra.mxu0 0
        %1069 = vmatprep.subr.bf16.mxu0 0
        %1070 = vmatpush2.bf16.msra.mxu0 0
        %1071 = vmatprep.subr.bf16.mxu0 0
        %1072 = vmatpush2.bf16.msra.mxu0 0
        %1073 = vmatprep.subr.bf16.mxu0 0
        %1074 = vmatpush2.bf16.msra.mxu0 0
        %1075 = vmatprep.subr.bf16.mxu0 0
        %1076 = vmatpush2.bf16.msra.mxu0 0
        %1077 = vmatprep.subr.bf16.mxu0 0
        %1078 = vmatpush2.bf16.msra.mxu0 0
        %1079 = vmatprep.subr.bf16.mxu0 0
        %1080 = vmatpush2.bf16.msra.mxu0 0
        %1081 = vmatprep.subr.bf16.mxu0 0
        %1082 = vmatpush2.bf16.msra.mxu0 0
        %1083 = vmatprep.mubr.bf16.mxu0 0
        %1084 = vmatmul.mubr.bf16.gmra.mxu0 %v1042
        %v1085 = vpop.f32.mrf.mxu0
        %v1086 = vadd.f32 %v1043, %v1085
        %v1087 = vpop.f32.mrf.mxu0
        %v1088 = vadd.f32 %v1044, %v1087
        %v1089 = vpop.f32.mrf.mxu0
        %v1090 = vpop.f32.mrf.mxu0
        %1091 = vdwg.mxu0
        %1092 = vmatprep.subr.bf16.mxu0 %v784
        %1093 = vmatpush1.bf16.msra.mxu0 %v783
        %1094 = vmatprep.subr.bf16.mxu0 %v780
        %1095 = vmatpush1.bf16.msra.mxu0 %v779
        %1096 = vmatprep.subr.bf16.mxu0 %v776
        %1097 = vmatpush1.bf16.msra.mxu0 %v775
        %1098 = vmatprep.subr.bf16.mxu0 %v772
        %1099 = vmatpush1.bf16.msra.mxu0 %v771
        %1100 = vmatprep.subr.bf16.mxu0 %v768
        %1101 = vmatpush1.bf16.msra.mxu0 %v767
        %1102 = vmatprep.subr.bf16.mxu0 %v764
        %1103 = vmatpush1.bf16.msra.mxu0 %v763
        %1104 = vmatprep.subr.bf16.mxu0 %v760
        %1105 = vmatpush1.bf16.msra.mxu0 %v759
        %1106 = vmatprep.subr.bf16.mxu0 %v756
        %1107 = vmatpush1.bf16.msra.mxu0 %v755
        %1108 = vmatprep.subr.bf16.mxu0 0
        %1109 = vmatpush2.bf16.msra.mxu0 0
        %1110 = vmatprep.subr.bf16.mxu0 0
        %1111 = vmatpush2.bf16.msra.mxu0 0
        %1112 = vmatprep.subr.bf16.mxu0 0
        %1113 = vmatpush2.bf16.msra.mxu0 0
        %1114 = vmatprep.subr.bf16.mxu0 0
        %1115 = vmatpush2.bf16.msra.mxu0 0
        %1116 = vmatprep.subr.bf16.mxu0 0
        %1117 = vmatpush2.bf16.msra.mxu0 0
        %1118 = vmatprep.subr.bf16.mxu0 0
        %1119 = vmatpush2.bf16.msra.mxu0 0
        %1120 = vmatprep.subr.bf16.mxu0 0
        %1121 = vmatpush2.bf16.msra.mxu0 0
        %1122 = vmatprep.subr.bf16.mxu0 0
        %1123 = vmatpush2.bf16.msra.mxu0 0
        %1124 = vmatprep.mubr.bf16.mxu0 0
        %1125 = vmatmul.mubr.bf16.gmra.mxu0 %v1042
        %v1126 = vpop.f32.mrf.mxu0
        %v1127 = vadd.f32 %v1045, %v1126
        %v1128 = vpop.f32.mrf.mxu0
        %v1129 = vadd.f32 %v1046, %v1128
        %v1130 = vpop.f32.mrf.mxu0
        %v1131 = vpop.f32.mrf.mxu0
        %1132 = vdwg.mxu0
        %v1133 = vxor.u32 %v1086, 2147483648
        %v1134 = vmul.f32 %v1133, 1.442695
        %v1135 = vpow.pop %v1134
        %v1136 = vadd.f32 %v1135, 1.0
        %v1137 = vrcp.pop %v1136
        %v1138 = vmul.f32 1.0, %v1137
        %v1139 = vxor.u32 %v1088, 2147483648
        %v1140 = vmul.f32 %v1139, 1.442695
        %v1141 = vpow.pop %v1140
        %v1142 = vadd.f32 %v1141, 1.0
        %v1143 = vrcp.pop %v1142
        %v1144 = vmul.f32 1.0, %v1143
        %v1145 = vtanh.pop %v1127
        %v1146 = vxor.u32 %v1129, 2147483648
        %v1147 = vmul.f32 %v1146, 1.442695
        %v1148 = vpow.pop %v1147
        %v1149 = vadd.f32 %v1148, 1.0
        %v1150 = vrcp.pop %v1149
        %v1151 = vmul.f32 1.0, %v1150
        %v1152 = vmul.f32 %v1144, %v1039
        %v1153 = vmul.f32 %v1138, %v1145
        %v1154 = vadd.f32 %v1152, %v1153
        %v1155 = vtanh.pop %v1154
        %v1156 = vmul.f32 %v1151, %v1155
        %v1157 = vpack.c.bf16 %v1156, %v1156
        %v1158 = vrot.slane %v574, 6
        %v1159 = vrot.slane %v576, 6
        %v1160 = vrot.slane %v617, 6
        %v1161 = vrot.slane %v619, 6
        %1166 = vmatprep.subr.bf16.mxu0 %v782
        %1167 = vmatpush1.bf16.msra.mxu0 %v781
        %1168 = vmatprep.subr.bf16.mxu0 %v778
        %1169 = vmatpush1.bf16.msra.mxu0 %v777
        %1170 = vmatprep.subr.bf16.mxu0 %v774
        %1171 = vmatpush1.bf16.msra.mxu0 %v773
        %1172 = vmatprep.subr.bf16.mxu0 %v770
        %1173 = vmatpush1.bf16.msra.mxu0 %v769
        %1174 = vmatprep.subr.bf16.mxu0 %v766
        %1175 = vmatpush1.bf16.msra.mxu0 %v765
        %1176 = vmatprep.subr.bf16.mxu0 %v762
        %1177 = vmatpush1.bf16.msra.mxu0 %v761
        %1178 = vmatprep.subr.bf16.mxu0 %v758
        %1179 = vmatpush1.bf16.msra.mxu0 %v757
        %1180 = vmatprep.subr.bf16.mxu0 %v754
        %1181 = vmatpush1.bf16.msra.mxu0 %v753
        %1182 = vmatprep.subr.bf16.mxu0 0
        %1183 = vmatpush2.bf16.msra.mxu0 0
        %1184 = vmatprep.subr.bf16.mxu0 0
        %1185 = vmatpush2.bf16.msra.mxu0 0
        %1186 = vmatprep.subr.bf16.mxu0 0
        %1187 = vmatpush2.bf16.msra.mxu0 0
        %1188 = vmatprep.subr.bf16.mxu0 0
        %1189 = vmatpush2.bf16.msra.mxu0 0
        %1190 = vmatprep.subr.bf16.mxu0 0
        %1191 = vmatpush2.bf16.msra.mxu0 0
        %1192 = vmatprep.subr.bf16.mxu0 0
        %1193 = vmatpush2.bf16.msra.mxu0 0
        %1194 = vmatprep.subr.bf16.mxu0 0
        %1195 = vmatpush2.bf16.msra.mxu0 0
        %1196 = vmatprep.subr.bf16.mxu0 0
        %1197 = vmatpush2.bf16.msra.mxu0 0
        %1198 = vmatprep.mubr.bf16.mxu0 0
        %1199 = vmatmul.mubr.bf16.gmra.mxu0 %v1157
        %v1200 = vpop.f32.mrf.mxu0
        %v1201 = vadd.f32 %v1158, %v1200
        %v1202 = vpop.f32.mrf.mxu0
        %v1203 = vadd.f32 %v1159, %v1202
        %v1204 = vpop.f32.mrf.mxu0
        %v1205 = vpop.f32.mrf.mxu0
        %1206 = vdwg.mxu0
        %1207 = vmatprep.subr.bf16.mxu0 %v784
        %1208 = vmatpush1.bf16.msra.mxu0 %v783
        %1209 = vmatprep.subr.bf16.mxu0 %v780
        %1210 = vmatpush1.bf16.msra.mxu0 %v779
        %1211 = vmatprep.subr.bf16.mxu0 %v776
        %1212 = vmatpush1.bf16.msra.mxu0 %v775
        %1213 = vmatprep.subr.bf16.mxu0 %v772
        %1214 = vmatpush1.bf16.msra.mxu0 %v771
        %1215 = vmatprep.subr.bf16.mxu0 %v768
        %1216 = vmatpush1.bf16.msra.mxu0 %v767
        %1217 = vmatprep.subr.bf16.mxu0 %v764
        %1218 = vmatpush1.bf16.msra.mxu0 %v763
        %1219 = vmatprep.subr.bf16.mxu0 %v760
        %1220 = vmatpush1.bf16.msra.mxu0 %v759
        %1221 = vmatprep.subr.bf16.mxu0 %v756
        %1222 = vmatpush1.bf16.msra.mxu0 %v755
        %1223 = vmatprep.subr.bf16.mxu0 0
        %1224 = vmatpush2.bf16.msra.mxu0 0
        %1225 = vmatprep.subr.bf16.mxu0 0
        %1226 = vmatpush2.bf16.msra.mxu0 0
        %1227 = vmatprep.subr.bf16.mxu0 0
        %1228 = vmatpush2.bf16.msra.mxu0 0
        %1229 = vmatprep.subr.bf16.mxu0 0
        %1230 = vmatpush2.bf16.msra.mxu0 0
        %1231 = vmatprep.subr.bf16.mxu0 0
        %1232 = vmatpush2.bf16.msra.mxu0 0
        %1233 = vmatprep.subr.bf16.mxu0 0
        %1234 = vmatpush2.bf16.msra.mxu0 0
        %1235 = vmatprep.subr.bf16.mxu0 0
        %1236 = vmatpush2.bf16.msra.mxu0 0
        %1237 = vmatprep.subr.bf16.mxu0 0
        %1238 = vmatpush2.bf16.msra.mxu0 0
        %1239 = vmatprep.mubr.bf16.mxu0 0
        %1240 = vmatmul.mubr.bf16.gmra.mxu0 %v1157
        %v1241 = vpop.f32.mrf.mxu0
        %v1242 = vadd.f32 %v1160, %v1241
        %v1243 = vpop.f32.mrf.mxu0
        %v1244 = vadd.f32 %v1161, %v1243
        %v1245 = vpop.f32.mrf.mxu0
        %v1246 = vpop.f32.mrf.mxu0
        %1247 = vdwg.mxu0
        %v1248 = vxor.u32 %v1201, 2147483648
        %v1249 = vmul.f32 %v1248, 1.442695
        %v1250 = vpow.pop %v1249
        %v1251 = vadd.f32 %v1250, 1.0
        %v1252 = vrcp.pop %v1251
        %v1253 = vmul.f32 1.0, %v1252
        %v1254 = vxor.u32 %v1203, 2147483648
        %v1255 = vmul.f32 %v1254, 1.442695
        %v1256 = vpow.pop %v1255
        %v1257 = vadd.f32 %v1256, 1.0
        %v1258 = vrcp.pop %v1257
        %v1259 = vmul.f32 1.0, %v1258
        %v1260 = vtanh.pop %v1242
        %v1261 = vxor.u32 %v1244, 2147483648
        %v1262 = vmul.f32 %v1261, 1.442695
        %v1263 = vpow.pop %v1262
        %v1264 = vadd.f32 %v1263, 1.0
        %v1265 = vrcp.pop %v1264
        %v1266 = vmul.f32 1.0, %v1265
        %v1267 = vmul.f32 %v1259, %v1154
        %v1268 = vmul.f32 %v1253, %v1260
        %v1269 = vadd.f32 %v1267, %v1268
        %v1270 = vtanh.pop %v1269
        %v1271 = vmul.f32 %v1266, %v1270
        %v1272 = vpack.c.bf16 %v1271, %v1271
        %1273 = vmatprep.subr.bf16.mxu0 %v782
        %1274 = vmatpush1.bf16.msra.mxu0 %v781
        %1275 = vmatprep.subr.bf16.mxu0 %v778
        %1276 = vmatpush1.bf16.msra.mxu0 %v777
        %1277 = vmatprep.subr.bf16.mxu0 %v774
        %1278 = vmatpush1.bf16.msra.mxu0 %v773
        %1279 = vmatprep.subr.bf16.mxu0 %v770
        %1280 = vmatpush1.bf16.msra.mxu0 %v769
        %1281 = vmatprep.subr.bf16.mxu0 %v766
        %1282 = vmatpush1.bf16.msra.mxu0 %v765
        %1283 = vmatprep.subr.bf16.mxu0 %v762
        %1284 = vmatpush1.bf16.msra.mxu0 %v761
        %1285 = vmatprep.subr.bf16.mxu0 %v758
        %1286 = vmatpush1.bf16.msra.mxu0 %v757
        %1287 = vmatprep.subr.bf16.mxu0 %v754
        %1288 = vmatpush1.bf16.msra.mxu0 %v753
        %1289 = vmatprep.subr.bf16.mxu0 0
        %1290 = vmatpush2.bf16.msra.mxu0 0
        %1291 = vmatprep.subr.bf16.mxu0 0
        %1292 = vmatpush2.bf16.msra.mxu0 0
        %1293 = vmatprep.subr.bf16.mxu0 0
        %1294 = vmatpush2.bf16.msra.mxu0 0
        %1295 = vmatprep.subr.bf16.mxu0 0
        %1296 = vmatpush2.bf16.msra.mxu0 0
        %1297 = vmatprep.subr.bf16.mxu0 0
        %1298 = vmatpush2.bf16.msra.mxu0 0
        %1299 = vmatprep.subr.bf16.mxu0 0
        %1300 = vmatpush2.bf16.msra.mxu0 0
        %1301 = vmatprep.subr.bf16.mxu0 0
        %1302 = vmatpush2.bf16.msra.mxu0 0
        %1303 = vmatprep.subr.bf16.mxu0 0
        %1304 = vmatpush2.bf16.msra.mxu0 0
        %1305 = vmatprep.mubr.bf16.mxu0 0
        %1306 = vmatmul.mubr.bf16.gmra.mxu0 %v1272
        %v1307 = vpop.f32.mrf.mxu0
        %v1308 = vadd.f32 %v578, %v1307
        %v1309 = vpop.f32.mrf.mxu0
        %v1310 = vadd.f32 %v580, %v1309
        %v1311 = vpop.f32.mrf.mxu0
        %v1312 = vpop.f32.mrf.mxu0
        %1313 = vdwg.mxu0
        %1314 = vmatprep.subr.bf16.mxu0 %v784
        %1315 = vmatpush1.bf16.msra.mxu0 %v783
        %1316 = vmatprep.subr.bf16.mxu0 %v780
        %1317 = vmatpush1.bf16.msra.mxu0 %v779
        %1318 = vmatprep.subr.bf16.mxu0 %v776
        %1319 = vmatpush1.bf16.msra.mxu0 %v775
        %1320 = vmatprep.subr.bf16.mxu0 %v772
        %1321 = vmatpush1.bf16.msra.mxu0 %v771
        %1322 = vmatprep.subr.bf16.mxu0 %v768
        %1323 = vmatpush1.bf16.msra.mxu0 %v767
        %1324 = vmatprep.subr.bf16.mxu0 %v764
        %1325 = vmatpush1.bf16.msra.mxu0 %v763
        %1326 = vmatprep.subr.bf16.mxu0 %v760
        %1327 = vmatpush1.bf16.msra.mxu0 %v759
        %1328 = vmatprep.subr.bf16.mxu0 %v756
        %1329 = vmatpush1.bf16.msra.mxu0 %v755
        %1330 = vmatprep.subr.bf16.mxu0 0
        %1331 = vmatpush2.bf16.msra.mxu0 0
        %1332 = vmatprep.subr.bf16.mxu0 0
        %1333 = vmatpush2.bf16.msra.mxu0 0
        %1334 = vmatprep.subr.bf16.mxu0 0
        %1335 = vmatpush2.bf16.msra.mxu0 0
        %1336 = vmatprep.subr.bf16.mxu0 0
        %1337 = vmatpush2.bf16.msra.mxu0 0
        %1338 = vmatprep.subr.bf16.mxu0 0
        %1339 = vmatpush2.bf16.msra.mxu0 0
        %1340 = vmatprep.subr.bf16.mxu0 0
        %1341 = vmatpush2.bf16.msra.mxu0 0
        %1342 = vmatprep.subr.bf16.mxu0 0
        %1343 = vmatpush2.bf16.msra.mxu0 0
        %1344 = vmatprep.subr.bf16.mxu0 0
        %1345 = vmatpush2.bf16.msra.mxu0 0
        %1346 = vmatprep.mubr.bf16.mxu0 0
        %1347 = vmatmul.mubr.bf16.gmra.mxu0 %v1272
        %v1348 = vpop.f32.mrf.mxu0
        %v1349 = vadd.f32 %v621, %v1348
        %v1350 = vpop.f32.mrf.mxu0
        %v1351 = vadd.f32 %v623, %v1350
        %v1352 = vpop.f32.mrf.mxu0
        %v1353 = vpop.f32.mrf.mxu0
        %1354 = vdwg.mxu0
        %v1355 = vxor.u32 %v1308, 2147483648
        %v1356 = vmul.f32 %v1355, 1.442695
        %v1357 = vpow.pop %v1356
        %v1358 = vadd.f32 %v1357, 1.0
        %v1359 = vrcp.pop %v1358
        %v1360 = vmul.f32 1.0, %v1359
        %v1361 = vxor.u32 %v1310, 2147483648
        %v1362 = vmul.f32 %v1361, 1.442695
        %v1363 = vpow.pop %v1362
        %v1364 = vadd.f32 %v1363, 1.0
        %v1365 = vrcp.pop %v1364
        %v1366 = vmul.f32 1.0, %v1365
        %v1367 = vtanh.pop %v1349
        %v1368 = vxor.u32 %v1351, 2147483648
        %v1369 = vmul.f32 %v1368, 1.442695
        %v1370 = vpow.pop %v1369
        %v1371 = vadd.f32 %v1370, 1.0
        %v1372 = vrcp.pop %v1371
        %v1373 = vmul.f32 1.0, %v1372
        %v1374 = vmul.f32 %v1366, %v1269
        %v1375 = vmul.f32 %v1360, %v1367
        %v1376 = vadd.f32 %v1374, %v1375
        %v1377 = vtanh.pop %v1376
        %v1378 = vmul.f32 %v1373, %v1377
        %v1379 = vpack.c.bf16 %v1378, %v1378
        %v1384 = vrot.slane %v578, 2
        %v1385 = vrot.slane %v580, 2
        %v1386 = vrot.slane %v621, 2
        %v1387 = vrot.slane %v623, 2
        %1392 = vmatprep.subr.bf16.mxu0 %v782
        %1393 = vmatpush1.bf16.msra.mxu0 %v781
        %1394 = vmatprep.subr.bf16.mxu0 %v778
        %1395 = vmatpush1.bf16.msra.mxu0 %v777
        %1396 = vmatprep.subr.bf16.mxu0 %v774
        %1397 = vmatpush1.bf16.msra.mxu0 %v773
        %1398 = vmatprep.subr.bf16.mxu0 %v770
        %1399 = vmatpush1.bf16.msra.mxu0 %v769
        %1400 = vmatprep.subr.bf16.mxu0 %v766
        %1401 = vmatpush1.bf16.msra.mxu0 %v765
        %1402 = vmatprep.subr.bf16.mxu0 %v762
        %1403 = vmatpush1.bf16.msra.mxu0 %v761
        %1404 = vmatprep.subr.bf16.mxu0 %v758
        %1405 = vmatpush1.bf16.msra.mxu0 %v757
        %1406 = vmatprep.subr.bf16.mxu0 %v754
        %1407 = vmatpush1.bf16.msra.mxu0 %v753
        %1408 = vmatprep.subr.bf16.mxu0 0
        %1409 = vmatpush2.bf16.msra.mxu0 0
        %1410 = vmatprep.subr.bf16.mxu0 0
        %1411 = vmatpush2.bf16.msra.mxu0 0
        %1412 = vmatprep.subr.bf16.mxu0 0
        %1413 = vmatpush2.bf16.msra.mxu0 0
        %1414 = vmatprep.subr.bf16.mxu0 0
        %1415 = vmatpush2.bf16.msra.mxu0 0
        %1416 = vmatprep.subr.bf16.mxu0 0
        %1417 = vmatpush2.bf16.msra.mxu0 0
        %1418 = vmatprep.subr.bf16.mxu0 0
        %1419 = vmatpush2.bf16.msra.mxu0 0
        %1420 = vmatprep.subr.bf16.mxu0 0
        %1421 = vmatpush2.bf16.msra.mxu0 0
        %1422 = vmatprep.subr.bf16.mxu0 0
        %1423 = vmatpush2.bf16.msra.mxu0 0
        %1424 = vmatprep.mubr.bf16.mxu0 0
        %1425 = vmatmul.mubr.bf16.gmra.mxu0 %v1379
        %v1426 = vpop.f32.mrf.mxu0
        %v1427 = vadd.f32 %v1384, %v1426
        %v1428 = vpop.f32.mrf.mxu0
        %v1429 = vadd.f32 %v1385, %v1428
        %v1430 = vpop.f32.mrf.mxu0
        %v1431 = vpop.f32.mrf.mxu0
        %1432 = vdwg.mxu0
        %1433 = vmatprep.subr.bf16.mxu0 %v784
        %1434 = vmatpush1.bf16.msra.mxu0 %v783
        %1435 = vmatprep.subr.bf16.mxu0 %v780
        %1436 = vmatpush1.bf16.msra.mxu0 %v779
        %1437 = vmatprep.subr.bf16.mxu0 %v776
        %1438 = vmatpush1.bf16.msra.mxu0 %v775
        %1439 = vmatprep.subr.bf16.mxu0 %v772
        %1440 = vmatpush1.bf16.msra.mxu0 %v771
        %1441 = vmatprep.subr.bf16.mxu0 %v768
        %1442 = vmatpush1.bf16.msra.mxu0 %v767
        %1443 = vmatprep.subr.bf16.mxu0 %v764
        %1444 = vmatpush1.bf16.msra.mxu0 %v763
        %1445 = vmatprep.subr.bf16.mxu0 %v760
        %1446 = vmatpush1.bf16.msra.mxu0 %v759
        %1447 = vmatprep.subr.bf16.mxu0 %v756
        %1448 = vmatpush1.bf16.msra.mxu0 %v755
        %1449 = vmatprep.subr.bf16.mxu0 0
        %1450 = vmatpush2.bf16.msra.mxu0 0
        %1451 = vmatprep.subr.bf16.mxu0 0
        %1452 = vmatpush2.bf16.msra.mxu0 0
        %1453 = vmatprep.subr.bf16.mxu0 0
        %1454 = vmatpush2.bf16.msra.mxu0 0
        %1455 = vmatprep.subr.bf16.mxu0 0
        %1456 = vmatpush2.bf16.msra.mxu0 0
        %1457 = vmatprep.subr.bf16.mxu0 0
        %1458 = vmatpush2.bf16.msra.mxu0 0
        %1459 = vmatprep.subr.bf16.mxu0 0
        %1460 = vmatpush2.bf16.msra.mxu0 0
        %1461 = vmatprep.subr.bf16.mxu0 0
        %1462 = vmatpush2.bf16.msra.mxu0 0
        %1463 = vmatprep.subr.bf16.mxu0 0
        %1464 = vmatpush2.bf16.msra.mxu0 0
        %1465 = vmatprep.mubr.bf16.mxu0 0
        %1466 = vmatmul.mubr.bf16.gmra.mxu0 %v1379
        %v1467 = vpop.f32.mrf.mxu0
        %v1468 = vadd.f32 %v1386, %v1467
        %v1469 = vpop.f32.mrf.mxu0
        %v1470 = vadd.f32 %v1387, %v1469
        %v1471 = vpop.f32.mrf.mxu0
        %v1472 = vpop.f32.mrf.mxu0
        %1473 = vdwg.mxu0
        %v1474 = vxor.u32 %v1427, 2147483648
        %v1475 = vmul.f32 %v1474, 1.442695
        %v1476 = vpow.pop %v1475
        %v1477 = vadd.f32 %v1476, 1.0
        %v1478 = vrcp.pop %v1477
        %v1479 = vmul.f32 1.0, %v1478
        %v1480 = vxor.u32 %v1429, 2147483648
        %v1481 = vmul.f32 %v1480, 1.442695
        %v1482 = vpow.pop %v1481
        %v1483 = vadd.f32 %v1482, 1.0
        %v1484 = vrcp.pop %v1483
        %v1485 = vmul.f32 1.0, %v1484
        %v1486 = vtanh.pop %v1468
        %v1487 = vxor.u32 %v1470, 2147483648
        %v1488 = vmul.f32 %v1487, 1.442695
        %v1489 = vpow.pop %v1488
        %v1490 = vadd.f32 %v1489, 1.0
        %v1491 = vrcp.pop %v1490
        %v1492 = vmul.f32 1.0, %v1491
        %v1493 = vmul.f32 %v1485, %v1376
        %v1494 = vmul.f32 %v1479, %v1486
        %v1495 = vadd.f32 %v1493, %v1494
        %v1496 = vtanh.pop %v1495
        %v1497 = vmul.f32 %v1492, %v1496
        %v1498 = vpack.c.bf16 %v1497, %v1497
        %v1499 = vrot.slane %v578, 4
        %v1500 = vrot.slane %v580, 4
        %v1501 = vrot.slane %v621, 4
        %v1502 = vrot.slane %v623, 4
        %1507 = vmatprep.subr.bf16.mxu0 %v782
        %1508 = vmatpush1.bf16.msra.mxu0 %v781
        %1509 = vmatprep.subr.bf16.mxu0 %v778
        %1510 = vmatpush1.bf16.msra.mxu0 %v777
        %1511 = vmatprep.subr.bf16.mxu0 %v774
        %1512 = vmatpush1.bf16.msra.mxu0 %v773
        %1513 = vmatprep.subr.bf16.mxu0 %v770
        %1514 = vmatpush1.bf16.msra.mxu0 %v769
        %1515 = vmatprep.subr.bf16.mxu0 %v766
        %1516 = vmatpush1.bf16.msra.mxu0 %v765
        %1517 = vmatprep.subr.bf16.mxu0 %v762
        %1518 = vmatpush1.bf16.msra.mxu0 %v761
        %1519 = vmatprep.subr.bf16.mxu0 %v758
        %1520 = vmatpush1.bf16.msra.mxu0 %v757
        %1521 = vmatprep.subr.bf16.mxu0 %v754
        %1522 = vmatpush1.bf16.msra.mxu0 %v753
        %1523 = vmatprep.subr.bf16.mxu0 0
        %1524 = vmatpush2.bf16.msra.mxu0 0
        %1525 = vmatprep.subr.bf16.mxu0 0
        %1526 = vmatpush2.bf16.msra.mxu0 0
        %1527 = vmatprep.subr.bf16.mxu0 0
        %1528 = vmatpush2.bf16.msra.mxu0 0
        %1529 = vmatprep.subr.bf16.mxu0 0
        %1530 = vmatpush2.bf16.msra.mxu0 0
        %1531 = vmatprep.subr.bf16.mxu0 0
        %1532 = vmatpush2.bf16.msra.mxu0 0
        %1533 = vmatprep.subr.bf16.mxu0 0
        %1534 = vmatpush2.bf16.msra.mxu0 0
        %1535 = vmatprep.subr.bf16.mxu0 0
        %1536 = vmatpush2.bf16.msra.mxu0 0
        %1537 = vmatprep.subr.bf16.mxu0 0
        %1538 = vmatpush2.bf16.msra.mxu0 0
        %1539 = vmatprep.mubr.bf16.mxu0 0
        %1540 = vmatmul.mubr.bf16.gmra.mxu0 %v1498
        %v1541 = vpop.f32.mrf.mxu0
        %v1542 = vadd.f32 %v1499, %v1541
        %v1543 = vpop.f32.mrf.mxu0
        %v1544 = vadd.f32 %v1500, %v1543
        %v1545 = vpop.f32.mrf.mxu0
        %v1546 = vpop.f32.mrf.mxu0
        %1547 = vdwg.mxu0
        %1548 = vmatprep.subr.bf16.mxu0 %v784
        %1549 = vmatpush1.bf16.msra.mxu0 %v783
        %1550 = vmatprep.subr.bf16.mxu0 %v780
        %1551 = vmatpush1.bf16.msra.mxu0 %v779
        %1552 = vmatprep.subr.bf16.mxu0 %v776
        %1553 = vmatpush1.bf16.msra.mxu0 %v775
        %1554 = vmatprep.subr.bf16.mxu0 %v772
        %1555 = vmatpush1.bf16.msra.mxu0 %v771
        %1556 = vmatprep.subr.bf16.mxu0 %v768
        %1557 = vmatpush1.bf16.msra.mxu0 %v767
        %1558 = vmatprep.subr.bf16.mxu0 %v764
        %1559 = vmatpush1.bf16.msra.mxu0 %v763
        %1560 = vmatprep.subr.bf16.mxu0 %v760
        %1561 = vmatpush1.bf16.msra.mxu0 %v759
        %1562 = vmatprep.subr.bf16.mxu0 %v756
        %1563 = vmatpush1.bf16.msra.mxu0 %v755
        %1564 = vmatprep.subr.bf16.mxu0 0
        %1565 = vmatpush2.bf16.msra.mxu0 0
        %1566 = vmatprep.subr.bf16.mxu0 0
        %1567 = vmatpush2.bf16.msra.mxu0 0
        %1568 = vmatprep.subr.bf16.mxu0 0
        %1569 = vmatpush2.bf16.msra.mxu0 0
        %1570 = vmatprep.subr.bf16.mxu0 0
        %1571 = vmatpush2.bf16.msra.mxu0 0
        %1572 = vmatprep.subr.bf16.mxu0 0
        %1573 = vmatpush2.bf16.msra.mxu0 0
        %1574 = vmatprep.subr.bf16.mxu0 0
        %1575 = vmatpush2.bf16.msra.mxu0 0
        %1576 = vmatprep.subr.bf16.mxu0 0
        %1577 = vmatpush2.bf16.msra.mxu0 0
        %1578 = vmatprep.subr.bf16.mxu0 0
        %1579 = vmatpush2.bf16.msra.mxu0 0
        %1580 = vmatprep.mubr.bf16.mxu0 0
        %1581 = vmatmul.mubr.bf16.gmra.mxu0 %v1498
        %v1582 = vpop.f32.mrf.mxu0
        %v1583 = vadd.f32 %v1501, %v1582
        %v1584 = vpop.f32.mrf.mxu0
        %v1585 = vadd.f32 %v1502, %v1584
        %v1586 = vpop.f32.mrf.mxu0
        %v1587 = vpop.f32.mrf.mxu0
        %1588 = vdwg.mxu0
        %v1589 = vxor.u32 %v1542, 2147483648
        %v1590 = vmul.f32 %v1589, 1.442695
        %v1591 = vpow.pop %v1590
        %v1592 = vadd.f32 %v1591, 1.0
        %v1593 = vrcp.pop %v1592
        %v1594 = vmul.f32 1.0, %v1593
        %v1595 = vxor.u32 %v1544, 2147483648
        %v1596 = vmul.f32 %v1595, 1.442695
        %v1597 = vpow.pop %v1596
        %v1598 = vadd.f32 %v1597, 1.0
        %v1599 = vrcp.pop %v1598
        %v1600 = vmul.f32 1.0, %v1599
        %v1601 = vtanh.pop %v1583
        %v1602 = vxor.u32 %v1585, 2147483648
        %v1603 = vmul.f32 %v1602, 1.442695
        %v1604 = vpow.pop %v1603
        %v1605 = vadd.f32 %v1604, 1.0
        %v1606 = vrcp.pop %v1605
        %v1607 = vmul.f32 1.0, %v1606
        %v1608 = vmul.f32 %v1600, %v1495
        %v1609 = vmul.f32 %v1594, %v1601
        %v1610 = vadd.f32 %v1608, %v1609
        %v1611 = vtanh.pop %v1610
        %v1612 = vmul.f32 %v1607, %v1611
        %v1613 = vpack.c.bf16 %v1612, %v1612
        %v1614 = vrot.slane %v578, 6
        %v1615 = vrot.slane %v580, 6
        %v1616 = vrot.slane %v621, 6
        %v1617 = vrot.slane %v623, 6
        %1622 = vmatprep.subr.bf16.mxu0 %v782
        %1623 = vmatpush1.bf16.msra.mxu0 %v781
        %1624 = vmatprep.subr.bf16.mxu0 %v778
        %1625 = vmatpush1.bf16.msra.mxu0 %v777
        %1626 = vmatprep.subr.bf16.mxu0 %v774
        %1627 = vmatpush1.bf16.msra.mxu0 %v773
        %1628 = vmatprep.subr.bf16.mxu0 %v770
        %1629 = vmatpush1.bf16.msra.mxu0 %v769
        %1630 = vmatprep.subr.bf16.mxu0 %v766
        %1631 = vmatpush1.bf16.msra.mxu0 %v765
        %1632 = vmatprep.subr.bf16.mxu0 %v762
        %1633 = vmatpush1.bf16.msra.mxu0 %v761
        %1634 = vmatprep.subr.bf16.mxu0 %v758
        %1635 = vmatpush1.bf16.msra.mxu0 %v757
        %1636 = vmatprep.subr.bf16.mxu0 %v754
        %1637 = vmatpush1.bf16.msra.mxu0 %v753
        %1638 = vmatprep.subr.bf16.mxu0 0
        %1639 = vmatpush2.bf16.msra.mxu0 0
        %1640 = vmatprep.subr.bf16.mxu0 0
        %1641 = vmatpush2.bf16.msra.mxu0 0
        %1642 = vmatprep.subr.bf16.mxu0 0
        %1643 = vmatpush2.bf16.msra.mxu0 0
        %1644 = vmatprep.subr.bf16.mxu0 0
        %1645 = vmatpush2.bf16.msra.mxu0 0
        %1646 = vmatprep.subr.bf16.mxu0 0
        %1647 = vmatpush2.bf16.msra.mxu0 0
        %1648 = vmatprep.subr.bf16.mxu0 0
        %1649 = vmatpush2.bf16.msra.mxu0 0
        %1650 = vmatprep.subr.bf16.mxu0 0
        %1651 = vmatpush2.bf16.msra.mxu0 0
        %1652 = vmatprep.subr.bf16.mxu0 0
        %1653 = vmatpush2.bf16.msra.mxu0 0
        %1654 = vmatprep.mubr.bf16.mxu0 0
        %1655 = vmatmul.mubr.bf16.gmra.mxu0 %v1613
        %v1656 = vpop.f32.mrf.mxu0
        %v1657 = vadd.f32 %v1614, %v1656
        %v1658 = vpop.f32.mrf.mxu0
        %v1659 = vadd.f32 %v1615, %v1658
        %v1660 = vpop.f32.mrf.mxu0
        %v1661 = vpop.f32.mrf.mxu0
        %1662 = vdwg.mxu0
        %1663 = vmatprep.subr.bf16.mxu0 %v784
        %1664 = vmatpush1.bf16.msra.mxu0 %v783
        %1665 = vmatprep.subr.bf16.mxu0 %v780
        %1666 = vmatpush1.bf16.msra.mxu0 %v779
        %1667 = vmatprep.subr.bf16.mxu0 %v776
        %1668 = vmatpush1.bf16.msra.mxu0 %v775
        %1669 = vmatprep.subr.bf16.mxu0 %v772
        %1670 = vmatpush1.bf16.msra.mxu0 %v771
        %1671 = vmatprep.subr.bf16.mxu0 %v768
        %1672 = vmatpush1.bf16.msra.mxu0 %v767
        %1673 = vmatprep.subr.bf16.mxu0 %v764
        %1674 = vmatpush1.bf16.msra.mxu0 %v763
        %1675 = vmatprep.subr.bf16.mxu0 %v760
        %1676 = vmatpush1.bf16.msra.mxu0 %v759
        %1677 = vmatprep.subr.bf16.mxu0 %v756
        %1678 = vmatpush1.bf16.msra.mxu0 %v755
        %1679 = vmatprep.subr.bf16.mxu0 0
        %1680 = vmatpush2.bf16.msra.mxu0 0
        %1681 = vmatprep.subr.bf16.mxu0 0
        %1682 = vmatpush2.bf16.msra.mxu0 0
        %1683 = vmatprep.subr.bf16.mxu0 0
        %1684 = vmatpush2.bf16.msra.mxu0 0
        %1685 = vmatprep.subr.bf16.mxu0 0
        %1686 = vmatpush2.bf16.msra.mxu0 0
        %1687 = vmatprep.subr.bf16.mxu0 0
        %1688 = vmatpush2.bf16.msra.mxu0 0
        %1689 = vmatprep.subr.bf16.mxu0 0
        %1690 = vmatpush2.bf16.msra.mxu0 0
        %1691 = vmatprep.subr.bf16.mxu0 0
        %1692 = vmatpush2.bf16.msra.mxu0 0
        %1693 = vmatprep.subr.bf16.mxu0 0
        %1694 = vmatpush2.bf16.msra.mxu0 0
        %1695 = vmatprep.mubr.bf16.mxu0 0
        %1696 = vmatmul.mubr.bf16.gmra.mxu0 %v1613
        %v1697 = vpop.f32.mrf.mxu0
        %v1698 = vadd.f32 %v1616, %v1697
        %v1699 = vpop.f32.mrf.mxu0
        %v1700 = vadd.f32 %v1617, %v1699
        %v1701 = vpop.f32.mrf.mxu0
        %v1702 = vpop.f32.mrf.mxu0
        %1703 = vdwg.mxu0
        %v1704 = vxor.u32 %v1657, 2147483648
        %v1705 = vmul.f32 %v1704, 1.442695
        %v1706 = vpow.pop %v1705
        %v1707 = vadd.f32 %v1706, 1.0
        %v1708 = vrcp.pop %v1707
        %v1709 = vmul.f32 1.0, %v1708
        %v1710 = vxor.u32 %v1659, 2147483648
        %v1711 = vmul.f32 %v1710, 1.442695
        %v1712 = vpow.pop %v1711
        %v1713 = vadd.f32 %v1712, 1.0
        %v1714 = vrcp.pop %v1713
        %v1715 = vmul.f32 1.0, %v1714
        %v1716 = vtanh.pop %v1698
        %v1717 = vxor.u32 %v1700, 2147483648
        %v1718 = vmul.f32 %v1717, 1.442695
        %v1719 = vpow.pop %v1718
        %v1720 = vadd.f32 %v1719, 1.0
        %v1721 = vrcp.pop %v1720
        %v1722 = vmul.f32 1.0, %v1721
        %v1723 = vmul.f32 %v1715, %v1610
        %v1724 = vmul.f32 %v1709, %v1716
        %v1725 = vadd.f32 %v1723, %v1724
        %v1726 = vtanh.pop %v1725
        %v1727 = vmul.f32 %v1722, %v1726
        %v1729 = vrot.slane %v1041, 6
        %v1732 = vrot.slane %v1156, 4
        %v1735 = vrot.slane %v1271, 2
        %v1738 = vrot.slane %v1497, 6
        %v1741 = vrot.slane %v1612, 4
        %v1744 = vrot.slane %v1727, 2
        %v1746 = vsel %vm445, %v922, %v1729
        %v1747 = vsel %vm449, %v1746, %v1732
        %v1748 = vsel %vm453, %v1747, %v1735
        %v1749 = vsel %vm445, %v1378, %v1738
        %v1750 = vsel %vm449, %v1749, %v1741
        %v1751 = vsel %vm453, %v1750, %v1744
        %v1752 = vpack.c.bf16 %v1751, %v1748
        %v1753 = vld [vmem:[%s5] sm:$0xf]
        %v1754 = vld [vmem:[%s5 + $0x4] sm:$0xf]
        %v1755 = vld [vmem:[%s5 + $0x8] sm:$0xf]
        %v1756 = vld [vmem:[%s5 + $0xc] sm:$0xf]
        %v1757 = vld [vmem:[%s5 + $0x10] sm:$0xf]
        %v1758 = vld [vmem:[%s5 + $0x14] sm:$0xf]
        %v1759 = vld [vmem:[%s5 + $0x18] sm:$0xf]
        %v1760 = vld [vmem:[%s5 + $0x1c] sm:$0xf]
        %v1761 = vld [vmem:[%s5 + $0x20] sm:$0xf]
        %v1762 = vld [vmem:[%s5 + $0x24] sm:$0xf]
        %v1763 = vld [vmem:[%s5 + $0x28] sm:$0xf]
        %v1764 = vld [vmem:[%s5 + $0x2c] sm:$0xf]
        %v1765 = vld [vmem:[%s5 + $0x30] sm:$0xf]
        %v1766 = vld [vmem:[%s5 + $0x34] sm:$0xf]
        %v1767 = vld [vmem:[%s5 + $0x38] sm:$0xf]
        %v1768 = vld [vmem:[%s5 + $0x3c] sm:$0xf]
        %v1769 = vld [vmem:[%s6] sm:$0x1]
        %v1771 = vlaneseq
        %v1772 = vshrl.u32 %v1771, 7
        %v1773 = vsub.s32 0, %v1772
        %v1774 = vrot.slane %v1769, %v1773
        %v1792 = vunpack.c.l.b16 %v1753
        %v1793 = vunpack.c.l.b16 %v1754
        %v1794 = vunpack.c.l.b16 %v1755
        %v1795 = vunpack.c.l.b16 %v1756
        %v1796 = vunpack.c.l.b16 %v1757
        %v1797 = vunpack.c.l.b16 %v1758
        %v1798 = vunpack.c.l.b16 %v1759
        %v1799 = vunpack.c.l.b16 %v1760
        %v1800 = vunpack.c.l.b16 %v1761
        %v1801 = vunpack.c.l.b16 %v1762
        %v1802 = vunpack.c.l.b16 %v1763
        %v1803 = vunpack.c.l.b16 %v1764
        %v1804 = vunpack.c.l.b16 %v1765
        %v1805 = vunpack.c.l.b16 %v1766
        %v1806 = vunpack.c.l.b16 %v1767
        %v1807 = vunpack.c.l.b16 %v1768
        %v1808 = vpack.c.b16 %v1793, %v1792
        %v1809 = vpack.c.b16 %v1795, %v1794
        %v1810 = vpack.c.b16 %v1797, %v1796
        %v1811 = vpack.c.b16 %v1799, %v1798
        %v1812 = vpack.c.b16 %v1801, %v1800
        %v1813 = vpack.c.b16 %v1803, %v1802
        %v1814 = vpack.c.b16 %v1805, %v1804
        %v1815 = vpack.c.b16 %v1807, %v1806
        %1824 = vmatprep.subr.bf16.mxu0 0
        %1825 = vmatpush1.bf16.msra.mxu0 %v1815
        %1826 = vmatprep.subr.bf16.mxu0 0
        %1827 = vmatpush1.bf16.msra.mxu0 %v1814
        %1828 = vmatprep.subr.bf16.mxu0 0
        %1829 = vmatpush1.bf16.msra.mxu0 %v1813
        %1830 = vmatprep.subr.bf16.mxu0 0
        %1831 = vmatpush1.bf16.msra.mxu0 %v1812
        %1832 = vmatprep.subr.bf16.mxu0 0
        %1833 = vmatpush1.bf16.msra.mxu0 %v1811
        %1834 = vmatprep.subr.bf16.mxu0 0
        %1835 = vmatpush1.bf16.msra.mxu0 %v1810
        %1836 = vmatprep.subr.bf16.mxu0 0
        %1837 = vmatpush1.bf16.msra.mxu0 %v1809
        %1838 = vmatprep.subr.bf16.mxu0 0
        %1839 = vmatpush1.bf16.msra.mxu0 %v1808
        %1840 = vmatprep.subr.bf16.mxu0 0
        %1841 = vmatpush2.bf16.msra.mxu0 0
        %1842 = vmatprep.subr.bf16.mxu0 0
        %1843 = vmatpush2.bf16.msra.mxu0 0
        %1844 = vmatprep.subr.bf16.mxu0 0
        %1845 = vmatpush2.bf16.msra.mxu0 0
        %1846 = vmatprep.subr.bf16.mxu0 0
        %1847 = vmatpush2.bf16.msra.mxu0 0
        %1848 = vmatprep.subr.bf16.mxu0 0
        %1849 = vmatpush2.bf16.msra.mxu0 0
        %1850 = vmatprep.subr.bf16.mxu0 0
        %1851 = vmatpush2.bf16.msra.mxu0 0
        %1852 = vmatprep.subr.bf16.mxu0 0
        %1853 = vmatpush2.bf16.msra.mxu0 0
        %1854 = vmatprep.subr.bf16.mxu0 0
        %1855 = vmatpush2.bf16.msra.mxu0 0
        %1856 = vmatprep.mubr.bf16.mxu0 0
        %1857 = vmatmul.mubr.bf16.gmra.mxu0 %v1752
        %v1858 = vpop.f32.mrf.mxu0
        %v1859 = vadd.f32 %v1774, %v1858
        %v1860 = vpop.f32.mrf.mxu0
        %v1861 = vpop.f32.mrf.mxu0
        %v1862 = vadd.f32 %v1774, %v1861
        %v1863 = vpop.f32.mrf.mxu0
        %1864 = vdwg.mxu0
        %vm1865 = vcmask 64512
        %v1866 = vsel %vm1865, %v1859, -inf
        %1867 = vmax.xlane.f32.xlu0 %v1866
        %v1868 = vpop.xlane.xlu0 %1867
        %v1869 = vsel %vm1865, %v1862, -inf
        %1870 = vmax.xlane.f32.xlu0 %v1869
        %v1871 = vpop.xlane.xlu0 %1870
        %v1872 = vsub.f32 %v1859, %v1868
        %v1873 = vsub.f32 %v1862, %v1871
        %v1874 = vmul.f32 %v1872, 1.442695
        %v1875 = vpow.pop %v1874
        %v1876 = vmul.f32 %v1873, 1.442695
        %v1877 = vpow.pop %v1876
        %v1878 = vsel %vm1865, %v1875, 0.0
        %1879 = vadd.xlane.f32.xlu0 %v1878
        %v1880 = vpop.xlane.xlu0 %1879
        %v1881 = vsel %vm1865, %v1877, 0.0
        %1882 = vadd.xlane.f32.xlu0 %v1881
        %v1883 = vpop.xlane.xlu0 %1882
        %v1884 = vlog2.pop %v1880
        %v1885 = vmul.f32 %v1884, 0.6931472
        %v1886 = vlog2.pop %v1883
        %v1887 = vmul.f32 %v1886, 0.6931472
        %v1888 = vadd.f32 %v1868, %v1885
        %v1889 = vadd.f32 %v1871, %v1887
        %v1890 = vsub.f32 %v1859, %v1888
        %v1891 = vsub.f32 %v1862, %v1889
        %1892 = vst.msk [vmem:[%s268] sm:$0xff] %vm1865, %v1890
        %1893 = vst.msk [vmem:[%s268 + $0x8] sm:$0xff] %vm1865, %v1891
        %s1894 = smul.u32 2, %s26
        %p1895 = scmp.lt.s32.totalorder %s1894, 3
        %s1896 = scalar_select %p1895, %s1894, 3
        %s1897 = smul.addr %s1896, 8
        %s1898 = scalar_lea.vmem %s7, %s1897
        // Predicated region
        $region53: #{tpu_custom_call.1} parent=43 // pred_check
          %p1899 = pneg %p170
        $region54: #{tpu_custom_call.1} parent=43 // pred_check_branch
          %1901 = sbr.rel (%p1899) target = $region56
        $region55: #{tpu_custom_call.1} parent=43 // pred_region
          %s1902 = smul.u32 2, %s26
        $region56: #{tpu_custom_call.1} parent=43 // pred_fallthru
          _
      $region44: #{tpu_custom_call.1} parent=5 // pred_fallthru
        _
      %p1903 = scmp.le.s32.totalorder 2, %s21
      // Predicated region
      $region57: #{tpu_custom_call.1} parent=5 // pred_check
        %p1904 = pneg %p1903
      $region58: #{tpu_custom_call.1} parent=5 // pred_check_branch
        %1906 = sbr.rel (%p1904) target = $region60
      $region59: #{tpu_custom_call.1} parent=5 // pred_region
        %s1907 = ssub.s32 %s21, 2
        // Predicated region
        $region61: #{tpu_custom_call.1} parent=59 // pred_check
          %p1908 = pneg %p176
        $region62: #{tpu_custom_call.1} parent=59 // pred_check_branch
          %1910 = sbr.rel (%p1908) target = $region64
        $region63: #{tpu_custom_call.1} parent=59 // pred_region
          %s1911 = smul.u32 2, %s27
          %p1912 = scmp.lt.s32.totalorder %s1911, 3
          %s1913 = scalar_select %p1912, %s1911, 3
          %s1914 = smul.addr %s1913, 8
          %s1915 = scalar_lea.vmem %s7, %s1914
        $region64: #{tpu_custom_call.1} parent=59 // pred_fallthru
          _
      $region60: #{tpu_custom_call.1} parent=5 // pred_fallthru
        _
    $region6: #{tpu_custom_call.1} parent=1 // loop_footer
      %s25 = sadd.s32 1, %s21
    $region7: #{tpu_custom_call.1} parent=1 // loop_footer_branch
      %20 = sbr.rel target = $region3
    $region8: #{tpu_custom_call.1} parent=1 // loop_exit
      _
    %1916 = vsyncpa [#allocation5], 1
    %s1917 = scalar_lea.sflag [#allocation5], 1
    %1918 = vsyncpa %s1917, 1
    %1919 = vsyncpa [#allocation7], 1

</llo_original>
